<compile_context>
chip_gen: v6e
topology: v6e:2x2x1
jax: 0.10.0
libtpu: 0.0.40
codegen_flags: <defaults>
</compile_context>

<pallas_src>
import jax
import jax.numpy as jnp
import numpy as np
from jax.experimental import pallas as pl
from jax.experimental.pallas import tpu as pltpu

# ----------------------------- model config ---------------------------------
B = 2            # batch
N = 16           # tokens (spatial patches)
E = 32           # emb_dim  (= input_shape[-1])
NUM_HEADS = 2
HEAD_DIM = 16
INNER = NUM_HEADS * HEAD_DIM          # 32
MLP_DIM = 64
TEMPORAL_DIM = 8
BEH_IN = 4 * TEMPORAL_DIM             # behavior_mode=4 -> in_dim = 4*T = 32
BEH_HID = E // 2                      # 16
FUSED_OUT = 3 * INNER + MLP_DIM       # 160
LN_EPS = 1e-5
SQRT_HALF = np.float32(0.7071067811865476)
NEG_BIG = -1e30


# ------------------------------- kernel -------------------------------------
def _block_kernel(x_ref, bp_ref, wb1_ref, bb1_ref, wb2_ref, bb2_ref,
                  gamma_ref, beta_ref, bias_ref,
                  wq_ref, wk_ref, wv_ref, wo_ref, wff_ref, wffo_ref, o_ref):
    """Single program: the whole (B*N, E) problem is resident in VMEM."""
    f32 = jnp.float32

    # --- BehaviorMLP on token-repeated behavior input: Linear->Tanh->Linear->Tanh
    h = jnp.tanh(jnp.dot(bp_ref[...], wb1_ref[...],
                         preferred_element_type=f32) + bb1_ref[...])       # (B*N, E/2)
    states = jnp.tanh(jnp.dot(h, wb2_ref[...],
                              preferred_element_type=f32) + bb2_ref[...])  # (B*N, E)

    # --- residual stream: x + repeat(states, 'b d -> b 1 d') ------------------
    x = x_ref[...] + states                                                # (B*N, E)

    # --- LayerNorm over emb dim ----------------------------------------------
    mean = jnp.mean(x, axis=-1, keepdims=True)
    var = jnp.mean(jnp.square(x - mean), axis=-1, keepdims=True)
    y = (x - mean) * jax.lax.rsqrt(var + LN_EPS) * gamma_ref[...] + beta_ref[...]

    # --- feed-forward branch (both batch rows in one matmul) ------------------
    ff = jnp.dot(y, wff_ref[...], preferred_element_type=f32)              # (B*N, MLP)
    ff_act = 0.5 * ff * (1.0 + jax.lax.erf(ff * SQRT_HALF))                # exact GELU
    ff_out = jnp.dot(ff_act, wffo_ref[...], preferred_element_type=f32)    # (B*N, E)

    # --- attention: both batch rows at once via block-diagonal score mask -----
    attn_bias = bias_ref[...]                                              # (B*N, B*N)
    acc = x + ff_out                                                       # parallel residual
    for hh in range(NUM_HEADS):
        q = jnp.dot(y, wq_ref[hh], preferred_element_type=f32)             # (B*N, D) scale folded
        k = jnp.dot(y, wk_ref[hh], preferred_element_type=f32)             # (B*N, D)
        v = jnp.dot(y, wv_ref[hh], preferred_element_type=f32)             # (B*N, D)
        sc = jax.lax.dot_general(q, k, (((1,), (1,)), ((), ())),
                                 preferred_element_type=f32)               # (B*N, B*N)
        sc = sc + attn_bias                                                # mask cross-batch
        sc = sc - jnp.max(sc, axis=-1, keepdims=True)
        p = jnp.exp(sc)
        p = p * pl.reciprocal(jnp.sum(p, axis=-1, keepdims=True))
        ctx = jnp.dot(p, v, preferred_element_type=f32)                    # (B*N, D)
        acc = acc + jnp.dot(ctx, wo_ref[hh], preferred_element_type=f32)   # (B*N, E)

    o_ref[...] = acc                                                       # single dense store


# ------------------------------ wrapper --------------------------------------
def prepare_params(params):
    """One-time weight transform: split fused/attn weights per head, fold scale,
    build the block-diagonal additive attention mask."""
    scale = np.float32(HEAD_DIM ** -0.5)
    wf = params["w_fused"]                                  # (E, 160)
    wq = (wf[:, 0 * INNER:1 * INNER] * scale
          ).reshape(E, NUM_HEADS, HEAD_DIM).transpose(1, 0, 2)   # (H, E, D)
    wk = wf[:, 1 * INNER:2 * INNER].reshape(E, NUM_HEADS, HEAD_DIM).transpose(1, 0, 2)
    wv = wf[:, 2 * INNER:3 * INNER].reshape(E, NUM_HEADS, HEAD_DIM).transpose(1, 0, 2)
    wff = wf[:, 3 * INNER:]                                 # (E, MLP_DIM)
    wo = params["w_attn"].reshape(NUM_HEADS, HEAD_DIM, E)   # (H, D, E) row-split

    # additive mask: 0 within a batch block, -1e30 across blocks
    ii = np.arange(B * N) // N
    attn_bias = np.where(ii[:, None] == ii[None, :], 0.0, NEG_BIG).astype(np.float32)

    return {
        "wb1": params["wb1"], "bb1": params["bb1"],
        "wb2": params["wb2"], "bb2": params["bb2"],
        "ln_gamma": params["ln_gamma"], "ln_beta": params["ln_beta"],
        "attn_bias": jnp.asarray(attn_bias),
        "wq": wq, "wk": wk, "wv": wv, "wo": wo,
        "wff": wff, "wffo": params["w_ff"],
    }


def parallel_transformer_block(inputs, behaviors, pupil_centers, kparams):
    """inputs: (B, N, E) f32; behaviors/pupil_centers: (B, 2*T) f32."""
    bp = jnp.concatenate([behaviors, pupil_centers], axis=-1)   # (B, 4T)
    bp_rep = jnp.repeat(bp, N, axis=0)                          # (B*N, 4T) token-repeated
    x2d = inputs.reshape(B * N, E)

    vmem = pl.BlockSpec(memory_space=pltpu.MemorySpace.VMEM)
    args = (x2d, bp_rep,
            kparams["wb1"], kparams["bb1"], kparams["wb2"], kparams["bb2"],
            kparams["ln_gamma"], kparams["ln_beta"], kparams["attn_bias"],
            kparams["wq"], kparams["wk"], kparams["wv"], kparams["wo"],
            kparams["wff"], kparams["wffo"])

    out2d = pl.pallas_call(
        _block_kernel,
        out_shape=jax.ShapeDtypeStruct((B * N, E), jnp.float32),
        in_specs=[vmem] * len(args),
        out_specs=vmem,
    )(*args)
    return out2d.reshape(B, N, E)


# --------------------------- pure-JAX reference -------------------------------
def reference(inputs, behaviors, pupil_centers, params):
    bp = jnp.concatenate([behaviors, pupil_centers], axis=-1)
    h = jnp.tanh(bp @ params["wb1"] + params["bb1"])
    states = jnp.tanh(h @ params["wb2"] + params["bb2"])                   # (B, E)
    x = inputs + states[:, None, :]
    mean = jnp.mean(x, axis=-1, keepdims=True)
    var = jnp.mean(jnp.square(x - mean), axis=-1, keepdims=True)
    y = (x - mean) / jnp.sqrt(var + LN_EPS) * params["ln_gamma"] + params["ln_beta"]
    fused = y @ params["w_fused"]
    q, k, v, ff = jnp.split(fused, [INNER, 2 * INNER, 3 * INNER], axis=-1)
    qh = q.reshape(B, N, NUM_HEADS, HEAD_DIM).transpose(0, 2, 1, 3)
    kh = k.reshape(B, N, NUM_HEADS, HEAD_DIM).transpose(0, 2, 1, 3)
    vh = v.reshape(B, N, NUM_HEADS, HEAD_DIM).transpose(0, 2, 1, 3)
    sc = jnp.einsum("bhnd,bhmd->bhnm", qh, kh) * (HEAD_DIM ** -0.5)
    p = jax.nn.softmax(sc, axis=-1)
    attn = jnp.einsum("bhnm,bhmd->bhnd", p, vh)
    attn = attn.transpose(0, 2, 1, 3).reshape(B, N, INNER)
    attn_out = attn @ params["w_attn"]
    ff_act = jax.nn.gelu(ff, approximate=False)
    ff_out = ff_act @ params["w_ff"]
    return x + attn_out + ff_out


# ------------------------------ param init ------------------------------------
def init_params(key):
    def trunc(k, shape, std=0.02):
        return jax.random.truncated_normal(k, -2.0, 2.0, shape, jnp.float32) * std

    ks = jax.random.split(key, 6)
    return {
        # BehaviorMLP (share), weights stored as (in, out)
        "wb1": trunc(ks[0], (BEH_IN, BEH_HID)),
        "bb1": jnp.zeros((1, BEH_HID), jnp.float32),
        "wb2": trunc(ks[1], (BEH_HID, E)),
        "bb2": jnp.zeros((1, E), jnp.float32),
        # LayerNorm (init: weight=1, bias=0)
        "ln_gamma": jnp.ones((1, E), jnp.float32),
        "ln_beta": jnp.zeros((1, E), jnp.float32),
        # fused q/k/v/ff projection, attention out, ff out (all bias-free)
        "w_fused": trunc(ks[2], (E, FUSED_OUT)),
        "w_attn": trunc(ks[3], (INNER, E)),
        "w_ff": trunc(ks[4], (MLP_DIM, E)),
    }


# ---------------------------------- main ---------------------------------------
if __name__ == "__main__":
    key = jax.random.PRNGKey(0)
    kx, kb, kp, kw = jax.random.split(key, 4)

    inputs = jax.random.normal(kx, (B, N, E), jnp.float32)
    behaviors = jax.random.normal(kb, (B, 2 * TEMPORAL_DIM), jnp.float32)
    pupil_centers = jax.random.normal(kp, (B, 2 * TEMPORAL_DIM), jnp.float32)
    params = init_params(kw)
    kparams = jax.tree_util.tree_map(jax.block_until_ready, prepare_params(params))

    out = parallel_transformer_block(inputs, behaviors, pupil_centers, kparams)
    out = jax.block_until_ready(out)

    ref = jax.block_until_ready(reference(inputs, behaviors, pupil_centers, params))
    np.testing.assert_allclose(np.asarray(out), np.asarray(ref), rtol=1e-5, atol=1e-5)

    print("KERNEL_OK")
</pallas_src>

<mosaic_0001>
module attributes {stable_mosaic.version = 11 : i64} {
  func.func @_block_kernel(%arg0: memref<32x32xf32, #tpu.memory_space<vmem>>, %arg1: memref<32x32xf32, #tpu.memory_space<vmem>>, %arg2: memref<32x16xf32, #tpu.memory_space<vmem>>, %arg3: memref<1x16xf32, #tpu.memory_space<vmem>>, %arg4: memref<16x32xf32, #tpu.memory_space<vmem>>, %arg5: memref<1x32xf32, #tpu.memory_space<vmem>>, %arg6: memref<1x32xf32, #tpu.memory_space<vmem>>, %arg7: memref<1x32xf32, #tpu.memory_space<vmem>>, %arg8: memref<32x32xf32, #tpu.memory_space<vmem>>, %arg9: memref<2x32x16xf32, #tpu.memory_space<vmem>>, %arg10: memref<2x32x16xf32, #tpu.memory_space<vmem>>, %arg11: memref<2x32x16xf32, #tpu.memory_space<vmem>>, %arg12: memref<2x16x32xf32, #tpu.memory_space<vmem>>, %arg13: memref<32x64xf32, #tpu.memory_space<vmem>>, %arg14: memref<64x32xf32, #tpu.memory_space<vmem>>, %arg15: memref<32x32xf32, #tpu.memory_space<vmem>>) attributes {dimension_semantics = [], scalar_prefetch = 0 : i64, scratch_operands = 0 : i64, tpu.core_type = #tpu.core_type<tc>} {
    %c0 = arith.constant 0 : index
    %c0_0 = arith.constant 0 : index
    %0 = vector.load %arg1[%c0, %c0_0] : memref<32x32xf32, #tpu.memory_space<vmem>>, vector<32x32xf32>
    %c0_1 = arith.constant 0 : index
    %c0_2 = arith.constant 0 : index
    %1 = vector.load %arg2[%c0_1, %c0_2] : memref<32x16xf32, #tpu.memory_space<vmem>>, vector<32x16xf32>
    %cst = arith.constant dense<0.000000e+00> : vector<32x16xf32>
    %2 = tpu.matmul %0, %1, %cst {dimension_numbers = #tpu.dot_dimension_numbers<[1], [0], [0], [1], [0, 0, 1, 1], [], []>} : vector<32x32xf32>, vector<32x16xf32>, vector<32x16xf32> -> vector<32x16xf32>
    %c0_3 = arith.constant 0 : index
    %c0_4 = arith.constant 0 : index
    %3 = vector.load %arg3[%c0_3, %c0_4] : memref<1x16xf32, #tpu.memory_space<vmem>>, vector<1x16xf32>
    %4 = vector.broadcast %3 : vector<1x16xf32> to vector<32x16xf32>
    %5 = arith.addf %2, %4 : vector<32x16xf32>
    %6 = math.tanh %5 : vector<32x16xf32>
    %c0_5 = arith.constant 0 : index
    %c0_6 = arith.constant 0 : index
    %7 = vector.load %arg4[%c0_5, %c0_6] : memref<16x32xf32, #tpu.memory_space<vmem>>, vector<16x32xf32>
    %cst_7 = arith.constant dense<0.000000e+00> : vector<32x32xf32>
    %8 = tpu.matmul %6, %7, %cst_7 {dimension_numbers = #tpu.dot_dimension_numbers<[1], [0], [0], [1], [0, 0, 1, 1], [], []>} : vector<32x16xf32>, vector<16x32xf32>, vector<32x32xf32> -> vector<32x32xf32>
    %c0_8 = arith.constant 0 : index
    %c0_9 = arith.constant 0 : index
    %9 = vector.load %arg5[%c0_8, %c0_9] : memref<1x32xf32, #tpu.memory_space<vmem>>, vector<1x32xf32>
    %10 = vector.broadcast %9 : vector<1x32xf32> to vector<32x32xf32>
    %11 = arith.addf %8, %10 : vector<32x32xf32>
    %12 = math.tanh %11 : vector<32x32xf32>
    %c0_10 = arith.constant 0 : index
    %c0_11 = arith.constant 0 : index
    %13 = vector.load %arg0[%c0_10, %c0_11] : memref<32x32xf32, #tpu.memory_space<vmem>>, vector<32x32xf32>
    %14 = arith.addf %13, %12 : vector<32x32xf32>
    %cst_12 = arith.constant dense<0.000000e+00> : vector<32xf32>
    %15 = vector.multi_reduction <add>, %14, %cst_12 [1] : vector<32x32xf32> to vector<32xf32>
    %16 = vector.shape_cast %15 : vector<32xf32> to vector<32x1xf32>
    %cst_13 = arith.constant 3.200000e+01 : f32
    %17 = vector.broadcast %cst_13 : f32 to vector<32x1xf32>
    %18 = arith.divf %16, %17 : vector<32x1xf32>
    %19 = vector.broadcast %18 : vector<32x1xf32> to vector<32x32xf32>
    %20 = arith.subf %14, %19 : vector<32x32xf32>
    %21 = arith.mulf %20, %20 : vector<32x32xf32>
    %cst_14 = arith.constant dense<0.000000e+00> : vector<32xf32>
    %22 = vector.multi_reduction <add>, %21, %cst_14 [1] : vector<32x32xf32> to vector<32xf32>
    %23 = vector.shape_cast %22 : vector<32xf32> to vector<32x1xf32>
    %cst_15 = arith.constant 3.200000e+01 : f32
    %24 = vector.broadcast %cst_15 : f32 to vector<32x1xf32>
    %25 = arith.divf %23, %24 : vector<32x1xf32>
    %26 = vector.broadcast %18 : vector<32x1xf32> to vector<32x32xf32>
    %27 = arith.subf %14, %26 : vector<32x32xf32>
    %cst_16 = arith.constant 9.99999974E-6 : f32
    %28 = vector.broadcast %cst_16 : f32 to vector<32x1xf32>
    %29 = arith.addf %25, %28 : vector<32x1xf32>
    %30 = math.rsqrt %29 : vector<32x1xf32>
    %31 = vector.broadcast %30 : vector<32x1xf32> to vector<32x32xf32>
    %32 = arith.mulf %27, %31 : vector<32x32xf32>
    %c0_17 = arith.constant 0 : index
    %c0_18 = arith.constant 0 : index
    %33 = vector.load %arg6[%c0_17, %c0_18] : memref<1x32xf32, #tpu.memory_space<vmem>>, vector<1x32xf32>
    %34 = vector.broadcast %33 : vector<1x32xf32> to vector<32x32xf32>
    %35 = arith.mulf %32, %34 : vector<32x32xf32>
    %c0_19 = arith.constant 0 : index
    %c0_20 = arith.constant 0 : index
    %36 = vector.load %arg7[%c0_19, %c0_20] : memref<1x32xf32, #tpu.memory_space<vmem>>, vector<1x32xf32>
    %37 = vector.broadcast %36 : vector<1x32xf32> to vector<32x32xf32>
    %38 = arith.addf %35, %37 : vector<32x32xf32>
    %c0_21 = arith.constant 0 : index
    %c0_22 = arith.constant 0 : index
    %39 = vector.load %arg13[%c0_21, %c0_22] : memref<32x64xf32, #tpu.memory_space<vmem>>, vector<32x64xf32>
    %cst_23 = arith.constant dense<0.000000e+00> : vector<32x64xf32>
    %40 = tpu.matmul %38, %39, %cst_23 {dimension_numbers = #tpu.dot_dimension_numbers<[1], [0], [0], [1], [0, 0, 1, 1], [], []>} : vector<32x32xf32>, vector<32x64xf32>, vector<32x64xf32> -> vector<32x64xf32>
    %cst_24 = arith.constant 5.000000e-01 : f32
    %41 = vector.broadcast %cst_24 : f32 to vector<32x64xf32>
    %42 = arith.mulf %41, %40 : vector<32x64xf32>
    %cst_25 = arith.constant 0.707106769 : f32
    %43 = vector.broadcast %cst_25 : f32 to vector<32x64xf32>
    %44 = arith.mulf %40, %43 : vector<32x64xf32>
    %45 = math.erf %44 : vector<32x64xf32>
    %cst_26 = arith.constant 1.000000e+00 : f32
    %46 = vector.broadcast %cst_26 : f32 to vector<32x64xf32>
    %47 = arith.addf %46, %45 : vector<32x64xf32>
    %48 = arith.mulf %42, %47 : vector<32x64xf32>
    %c0_27 = arith.constant 0 : index
    %c0_28 = arith.constant 0 : index
    %49 = vector.load %arg14[%c0_27, %c0_28] : memref<64x32xf32, #tpu.memory_space<vmem>>, vector<64x32xf32>
    %cst_29 = arith.constant dense<0.000000e+00> : vector<32x32xf32>
    %50 = tpu.matmul %48, %49, %cst_29 {dimension_numbers = #tpu.dot_dimension_numbers<[1], [0], [0], [1], [0, 0, 1, 1], [], []>} : vector<32x64xf32>, vector<64x32xf32>, vector<32x32xf32> -> vector<32x32xf32>
    %c0_30 = arith.constant 0 : index
    %c0_31 = arith.constant 0 : index
    %51 = vector.load %arg8[%c0_30, %c0_31] : memref<32x32xf32, #tpu.memory_space<vmem>>, vector<32x32xf32>
    %52 = arith.addf %14, %50 : vector<32x32xf32>
    %c0_32 = arith.constant 0 : index
    %c0_33 = arith.constant 0 : index
    %c0_34 = arith.constant 0 : index
    %53 = vector.load %arg9[%c0_32, %c0_33, %c0_34] : memref<2x32x16xf32, #tpu.memory_space<vmem>>, vector<1x32x16xf32>
    %54 = vector.shape_cast %53 : vector<1x32x16xf32> to vector<32x16xf32>
    %cst_35 = arith.constant dense<0.000000e+00> : vector<32x16xf32>
    %55 = tpu.matmul %38, %54, %cst_35 {dimension_numbers = #tpu.dot_dimension_numbers<[1], [0], [0], [1], [0, 0, 1, 1], [], []>} : vector<32x32xf32>, vector<32x16xf32>, vector<32x16xf32> -> vector<32x16xf32>
    %c0_36 = arith.constant 0 : index
    %c0_37 = arith.constant 0 : index
    %c0_38 = arith.constant 0 : index
    %56 = vector.load %arg10[%c0_36, %c0_37, %c0_38] : memref<2x32x16xf32, #tpu.memory_space<vmem>>, vector<1x32x16xf32>
    %57 = vector.shape_cast %56 : vector<1x32x16xf32> to vector<32x16xf32>
    %cst_39 = arith.constant dense<0.000000e+00> : vector<32x16xf32>
    %58 = tpu.matmul %38, %57, %cst_39 {dimension_numbers = #tpu.dot_dimension_numbers<[1], [0], [0], [1], [0, 0, 1, 1], [], []>} : vector<32x32xf32>, vector<32x16xf32>, vector<32x16xf32> -> vector<32x16xf32>
    %c0_40 = arith.constant 0 : index
    %c0_41 = arith.constant 0 : index
    %c0_42 = arith.constant 0 : index
    %59 = vector.load %arg11[%c0_40, %c0_41, %c0_42] : memref<2x32x16xf32, #tpu.memory_space<vmem>>, vector<1x32x16xf32>
    %60 = vector.shape_cast %59 : vector<1x32x16xf32> to vector<32x16xf32>
    %cst_43 = arith.constant dense<0.000000e+00> : vector<32x16xf32>
    %61 = tpu.matmul %38, %60, %cst_43 {dimension_numbers = #tpu.dot_dimension_numbers<[1], [0], [0], [1], [0, 0, 1, 1], [], []>} : vector<32x32xf32>, vector<32x16xf32>, vector<32x16xf32> -> vector<32x16xf32>
    %cst_44 = arith.constant dense<0.000000e+00> : vector<32x32xf32>
    %62 = tpu.matmul %55, %58, %cst_44 {dimension_numbers = #tpu.dot_dimension_numbers<[1], [1], [0], [0], [0, 0, 1, 0], [], []>} : vector<32x16xf32>, vector<32x16xf32>, vector<32x32xf32> -> vector<32x32xf32>
    %63 = arith.addf %62, %51 : vector<32x32xf32>
    %cst_45 = arith.constant dense<0xFF800000> : vector<32xf32>
    %64 = vector.multi_reduction <maximumf>, %63, %cst_45 [1] : vector<32x32xf32> to vector<32xf32>
    %65 = vector.shape_cast %64 : vector<32xf32> to vector<32x1xf32>
    %66 = vector.broadcast %65 : vector<32x1xf32> to vector<32x32xf32>
    %67 = arith.subf %63, %66 : vector<32x32xf32>
    %68 = math.exp %67 : vector<32x32xf32>
    %cst_46 = arith.constant dense<0.000000e+00> : vector<32xf32>
    %69 = vector.multi_reduction <add>, %68, %cst_46 [1] : vector<32x32xf32> to vector<32xf32>
    %70 = vector.shape_cast %69 : vector<32xf32> to vector<32x1xf32>
    %71 = tpu.reciprocal %70 : vector<32x1xf32> -> vector<32x1xf32>
    %72 = vector.broadcast %71 : vector<32x1xf32> to vector<32x32xf32>
    %73 = arith.mulf %68, %72 : vector<32x32xf32>
    %cst_47 = arith.constant dense<0.000000e+00> : vector<32x16xf32>
    %74 = tpu.matmul %73, %61, %cst_47 {dimension_numbers = #tpu.dot_dimension_numbers<[1], [0], [0], [1], [0, 0, 1, 1], [], []>} : vector<32x32xf32>, vector<32x16xf32>, vector<32x16xf32> -> vector<32x16xf32>
    %c0_48 = arith.constant 0 : index
    %c0_49 = arith.constant 0 : index
    %c0_50 = arith.constant 0 : index
    %75 = vector.load %arg12[%c0_48, %c0_49, %c0_50] : memref<2x16x32xf32, #tpu.memory_space<vmem>>, vector<1x16x32xf32>
    %76 = vector.shape_cast %75 : vector<1x16x32xf32> to vector<16x32xf32>
    %cst_51 = arith.constant dense<0.000000e+00> : vector<32x32xf32>
    %77 = tpu.matmul %74, %76, %cst_51 {dimension_numbers = #tpu.dot_dimension_numbers<[1], [0], [0], [1], [0, 0, 1, 1], [], []>} : vector<32x16xf32>, vector<16x32xf32>, vector<32x32xf32> -> vector<32x32xf32>
    %78 = arith.addf %52, %77 : vector<32x32xf32>
    %c1 = arith.constant 1 : index
    %c0_52 = arith.constant 0 : index
    %c0_53 = arith.constant 0 : index
    %79 = vector.load %arg9[%c1, %c0_52, %c0_53] : memref<2x32x16xf32, #tpu.memory_space<vmem>>, vector<1x32x16xf32>
    %80 = vector.shape_cast %79 : vector<1x32x16xf32> to vector<32x16xf32>
    %cst_54 = arith.constant dense<0.000000e+00> : vector<32x16xf32>
    %81 = tpu.matmul %38, %80, %cst_54 {dimension_numbers = #tpu.dot_dimension_numbers<[1], [0], [0], [1], [0, 0, 1, 1], [], []>} : vector<32x32xf32>, vector<32x16xf32>, vector<32x16xf32> -> vector<32x16xf32>
    %c1_55 = arith.constant 1 : index
    %c0_56 = arith.constant 0 : index
    %c0_57 = arith.constant 0 : index
    %82 = vector.load %arg10[%c1_55, %c0_56, %c0_57] : memref<2x32x16xf32, #tpu.memory_space<vmem>>, vector<1x32x16xf32>
    %83 = vector.shape_cast %82 : vector<1x32x16xf32> to vector<32x16xf32>
    %cst_58 = arith.constant dense<0.000000e+00> : vector<32x16xf32>
    %84 = tpu.matmul %38, %83, %cst_58 {dimension_numbers = #tpu.dot_dimension_numbers<[1], [0], [0], [1], [0, 0, 1, 1], [], []>} : vector<32x32xf32>, vector<32x16xf32>, vector<32x16xf32> -> vector<32x16xf32>
    %c1_59 = arith.constant 1 : index
    %c0_60 = arith.constant 0 : index
    %c0_61 = arith.constant 0 : index
    %85 = vector.load %arg11[%c1_59, %c0_60, %c0_61] : memref<2x32x16xf32, #tpu.memory_space<vmem>>, vector<1x32x16xf32>
    %86 = vector.shape_cast %85 : vector<1x32x16xf32> to vector<32x16xf32>
    %cst_62 = arith.constant dense<0.000000e+00> : vector<32x16xf32>
    %87 = tpu.matmul %38, %86, %cst_62 {dimension_numbers = #tpu.dot_dimension_numbers<[1], [0], [0], [1], [0, 0, 1, 1], [], []>} : vector<32x32xf32>, vector<32x16xf32>, vector<32x16xf32> -> vector<32x16xf32>
    %cst_63 = arith.constant dense<0.000000e+00> : vector<32x32xf32>
    %88 = tpu.matmul %81, %84, %cst_63 {dimension_numbers = #tpu.dot_dimension_numbers<[1], [1], [0], [0], [0, 0, 1, 0], [], []>} : vector<32x16xf32>, vector<32x16xf32>, vector<32x32xf32> -> vector<32x32xf32>
    %89 = arith.addf %88, %51 : vector<32x32xf32>
    %cst_64 = arith.constant dense<0xFF800000> : vector<32xf32>
    %90 = vector.multi_reduction <maximumf>, %89, %cst_64 [1] : vector<32x32xf32> to vector<32xf32>
    %91 = vector.shape_cast %90 : vector<32xf32> to vector<32x1xf32>
    %92 = vector.broadcast %91 : vector<32x1xf32> to vector<32x32xf32>
    %93 = arith.subf %89, %92 : vector<32x32xf32>
    %94 = math.exp %93 : vector<32x32xf32>
    %cst_65 = arith.constant dense<0.000000e+00> : vector<32xf32>
    %95 = vector.multi_reduction <add>, %94, %cst_65 [1] : vector<32x32xf32> to vector<32xf32>
    %96 = vector.shape_cast %95 : vector<32xf32> to vector<32x1xf32>
    %97 = tpu.reciprocal %96 : vector<32x1xf32> -> vector<32x1xf32>
    %98 = vector.broadcast %97 : vector<32x1xf32> to vector<32x32xf32>
    %99 = arith.mulf %94, %98 : vector<32x32xf32>
    %cst_66 = arith.constant dense<0.000000e+00> : vector<32x16xf32>
    %100 = tpu.matmul %99, %87, %cst_66 {dimension_numbers = #tpu.dot_dimension_numbers<[1], [0], [0], [1], [0, 0, 1, 1], [], []>} : vector<32x32xf32>, vector<32x16xf32>, vector<32x16xf32> -> vector<32x16xf32>
    %c1_67 = arith.constant 1 : index
    %c0_68 = arith.constant 0 : index
    %c0_69 = arith.constant 0 : index
    %101 = vector.load %arg12[%c1_67, %c0_68, %c0_69] : memref<2x16x32xf32, #tpu.memory_space<vmem>>, vector<1x16x32xf32>
    %102 = vector.shape_cast %101 : vector<1x16x32xf32> to vector<16x32xf32>
    %cst_70 = arith.constant dense<0.000000e+00> : vector<32x32xf32>
    %103 = tpu.matmul %100, %102, %cst_70 {dimension_numbers = #tpu.dot_dimension_numbers<[1], [0], [0], [1], [0, 0, 1, 1], [], []>} : vector<32x16xf32>, vector<16x32xf32>, vector<32x32xf32> -> vector<32x32xf32>
    %104 = arith.addf %78, %103 : vector<32x32xf32>
    %c0_71 = arith.constant 0 : index
    %c0_72 = arith.constant 0 : index
    %105 = vector.load %arg15[%c0_71, %c0_72] : memref<32x32xf32, #tpu.memory_space<vmem>>, vector<32x32xf32>
    tpu.vector_store %arg15[%c0_71, %c0_72], %104 {strides = array<i32>} : memref<32x32xf32, #tpu.memory_space<vmem>>, vector<32x32xf32>,
    return
  }
}

</mosaic_0001>

<llo_original>
// kernel: tpu_custom_call.1
$region0: #{tpu_custom_call.1}
  #allocation0 [shape = 'u32[]', space=smem, size = 0x4, offset = 0x4, fixed_abs, tag = 'smem constant byte address 0x4 - core index']
  #allocation1 [shape = 'u32[144,128]{1,0:T(1,128)}', space=vmem, size = 0x12000, scoped, tag = 'internal scratch']
  %s0 = inlined_call_operand.vmem [shape: f32[32,32], index: 0, kind: input, shape index: {}]
  %s1 = inlined_call_operand.vmem [shape: f32[32,32], index: 1, kind: input, shape index: {}]
  %s2 = inlined_call_operand.vmem [shape: f32[32,16], index: 2, kind: input, shape index: {}]
  %s3 = inlined_call_operand.vmem [shape: f32[1,16], index: 3, kind: input, shape index: {}]
  %s4 = inlined_call_operand.vmem [shape: f32[16,32], index: 4, kind: input, shape index: {}]
  %s5 = inlined_call_operand.vmem [shape: f32[1,32], index: 5, kind: input, shape index: {}]
  %s6 = inlined_call_operand.vmem [shape: f32[1,32], index: 6, kind: input, shape index: {}]
  %s7 = inlined_call_operand.vmem [shape: f32[1,32], index: 7, kind: input, shape index: {}]
  %s8 = inlined_call_operand.vmem [shape: f32[32,32], index: 8, kind: input, shape index: {}]
  %s9 = inlined_call_operand.vmem [shape: f32[2,32,16], index: 9, kind: input, shape index: {}]
  %s10 = inlined_call_operand.vmem [shape: f32[2,32,16], index: 10, kind: input, shape index: {}]
  %s11 = inlined_call_operand.vmem [shape: f32[2,32,16], index: 11, kind: input, shape index: {}]
  %s12 = inlined_call_operand.vmem [shape: f32[2,16,32], index: 12, kind: input, shape index: {}]
  %s13 = inlined_call_operand.vmem [shape: f32[32,64], index: 13, kind: input, shape index: {}]
  %s14 = inlined_call_operand.vmem [shape: f32[64,32], index: 14, kind: input, shape index: {}]
  %s15 = inlined_call_operand.hbm [shape: f32[32,32], index: 15, kind: output, shape index: {}]
  %s16 = sld [smem:[#allocation0]]
  $region70: #{tpu_custom_call.1} parent=0
    _
  %s18 = ssub.s32 1, %s16
  %s19 = scalar_select 0, %s18, %s16
  $region1: #{tpu_custom_call.1} parent=0
    #allocation2 [shape = 'u8[16384]{0}', space=vmem, size = 0x4000, scoped, tag = 'output window, operand 0, single buffered']
    #allocation3 [shape = 's32[1]{0}', space=sflag, size = 0x4, scoped, tag = 'scoped memory for tpu_custom_call.1']
    %20 = vsyncpa [#allocation3], 0
    // Predicated region
    $region2: #{tpu_custom_call.1} parent=1 // pred_check
      _
    $region3: #{tpu_custom_call.1} parent=1 // pred_check_branch
      %22 = sbr.rel (0) target = $region5
    $region4: #{tpu_custom_call.1} parent=1 // pred_region
      _
    $region5: #{tpu_custom_call.1} parent=1 // pred_fallthru
      _
    // Predicated region
    $region6: #{tpu_custom_call.1} parent=1 // pred_check
      _
    $region7: #{tpu_custom_call.1} parent=1 // pred_check_branch
      %24 = sbr.rel (0) target = $region9
    $region8: #{tpu_custom_call.1} parent=1 // pred_region
      _
    $region9: #{tpu_custom_call.1} parent=1 // pred_fallthru
      _
    // Predicated region
    $region10: #{tpu_custom_call.1} parent=1 // pred_check
      _
    $region11: #{tpu_custom_call.1} parent=1 // pred_check_branch
      %26 = sbr.rel (0) target = $region13
    $region12: #{tpu_custom_call.1} parent=1 // pred_region
      _
    $region13: #{tpu_custom_call.1} parent=1 // pred_fallthru
      _
    // Predicated region
    $region14: #{tpu_custom_call.1} parent=1 // pred_check
      _
    $region15: #{tpu_custom_call.1} parent=1 // pred_check_branch
      %28 = sbr.rel (0) target = $region17
    $region16: #{tpu_custom_call.1} parent=1 // pred_region
      _
    $region17: #{tpu_custom_call.1} parent=1 // pred_fallthru
      _
    // Predicated region
    $region18: #{tpu_custom_call.1} parent=1 // pred_check
      _
    $region19: #{tpu_custom_call.1} parent=1 // pred_check_branch
      %30 = sbr.rel (0) target = $region21
    $region20: #{tpu_custom_call.1} parent=1 // pred_region
      _
    $region21: #{tpu_custom_call.1} parent=1 // pred_fallthru
      _
    // Predicated region
    $region22: #{tpu_custom_call.1} parent=1 // pred_check
      _
    $region23: #{tpu_custom_call.1} parent=1 // pred_check_branch
      %32 = sbr.rel (0) target = $region25
    $region24: #{tpu_custom_call.1} parent=1 // pred_region
      _
    $region25: #{tpu_custom_call.1} parent=1 // pred_fallthru
      _
    // Predicated region
    $region26: #{tpu_custom_call.1} parent=1 // pred_check
      _
    $region27: #{tpu_custom_call.1} parent=1 // pred_check_branch
      %34 = sbr.rel (0) target = $region29
    $region28: #{tpu_custom_call.1} parent=1 // pred_region
      _
    $region29: #{tpu_custom_call.1} parent=1 // pred_fallthru
      _
    // Predicated region
    $region30: #{tpu_custom_call.1} parent=1 // pred_check
      _
    $region31: #{tpu_custom_call.1} parent=1 // pred_check_branch
      %36 = sbr.rel (0) target = $region33
    $region32: #{tpu_custom_call.1} parent=1 // pred_region
      _
    $region33: #{tpu_custom_call.1} parent=1 // pred_fallthru
      _
    // Predicated region
    $region34: #{tpu_custom_call.1} parent=1 // pred_check
      _
    $region35: #{tpu_custom_call.1} parent=1 // pred_check_branch
      %38 = sbr.rel (0) target = $region37
    $region36: #{tpu_custom_call.1} parent=1 // pred_region
      _
    $region37: #{tpu_custom_call.1} parent=1 // pred_fallthru
      _
    // Predicated region
    $region38: #{tpu_custom_call.1} parent=1 // pred_check
      _
    $region39: #{tpu_custom_call.1} parent=1 // pred_check_branch
      %40 = sbr.rel (0) target = $region41
    $region40: #{tpu_custom_call.1} parent=1 // pred_region
      _
    $region41: #{tpu_custom_call.1} parent=1 // pred_fallthru
      _
    // Predicated region
    $region42: #{tpu_custom_call.1} parent=1 // pred_check
      _
    $region43: #{tpu_custom_call.1} parent=1 // pred_check_branch
      %42 = sbr.rel (0) target = $region45
    $region44: #{tpu_custom_call.1} parent=1 // pred_region
      _
    $region45: #{tpu_custom_call.1} parent=1 // pred_fallthru
      _
    // Predicated region
    $region46: #{tpu_custom_call.1} parent=1 // pred_check
      _
    $region47: #{tpu_custom_call.1} parent=1 // pred_check_branch
      %44 = sbr.rel (0) target = $region49
    $region48: #{tpu_custom_call.1} parent=1 // pred_region
      _
    $region49: #{tpu_custom_call.1} parent=1 // pred_fallthru
      _
    // Predicated region
    $region50: #{tpu_custom_call.1} parent=1 // pred_check
      _
    $region51: #{tpu_custom_call.1} parent=1 // pred_check_branch
      %46 = sbr.rel (0) target = $region53
    $region52: #{tpu_custom_call.1} parent=1 // pred_region
      _
    $region53: #{tpu_custom_call.1} parent=1 // pred_fallthru
      _
    // Predicated region
    $region54: #{tpu_custom_call.1} parent=1 // pred_check
      _
    $region55: #{tpu_custom_call.1} parent=1 // pred_check_branch
      %48 = sbr.rel (0) target = $region57
    $region56: #{tpu_custom_call.1} parent=1 // pred_region
      _
    $region57: #{tpu_custom_call.1} parent=1 // pred_fallthru
      _
    // Predicated region
    $region58: #{tpu_custom_call.1} parent=1 // pred_check
      _
    $region59: #{tpu_custom_call.1} parent=1 // pred_check_branch
      %50 = sbr.rel (0) target = $region61
    $region60: #{tpu_custom_call.1} parent=1 // pred_region
      _
    $region61: #{tpu_custom_call.1} parent=1 // pred_fallthru
      _
    %v51 = vld [vmem:[%s1] sm:$0xff]
    %v52 = vld [vmem:[%s1 + $0x8] sm:$0xff]
    %v53 = vld [vmem:[%s1 + $0x10] sm:$0xff]
    %v54 = vld [vmem:[%s1 + $0x18] sm:$0xff]
    %v55 = vld [vmem:[%s2] sm:$0xff]
    %v56 = vld [vmem:[%s2 + $0x8] sm:$0xff]
    %v57 = vld [vmem:[%s2 + $0x10] sm:$0xff]
    %v58 = vld [vmem:[%s2 + $0x18] sm:$0xff]
    %v59 = vld [vmem:[%s3] sm:$0x1]
    %v61 = vlaneseq
    %v62 = vshrl.u32 %v61, 7
    %v63 = vsub.s32 0, %v62
    %v64 = vrot.slane %v59, %v63
    %vm66 = vcmask 261120
    %v68 = vsel %vm66, %v51, 0
    %v71 = vsel %vm66, %v52, 0
    %v74 = vsel %vm66, %v53, 0
    %v77 = vsel %vm66, %v54, 0
    %79 = vmatprep.subr.mxu0 0.0
    %80 = vmatpush1.msra.mxu0 0.0
    %81 = vmatprep.subr.mxu0 0.0
    %82 = vmatpush1.msra.mxu0 0.0
    %83 = vmatprep.subr.mxu0 0.0
    %84 = vmatpush1.msra.mxu0 0.0
    %85 = vmatprep.subr.mxu0 0.0
    %86 = vmatpush1.msra.mxu0 0.0
    %87 = vmatprep.subr.mxu0 0.0
    %88 = vmatpush1.msra.mxu0 0.0
    %89 = vmatprep.subr.mxu0 0.0
    %90 = vmatpush1.msra.mxu0 0.0
    %91 = vmatprep.subr.mxu0 0.0
    %92 = vmatpush1.msra.mxu0 0.0
    %93 = vmatprep.subr.mxu0 0.0
    %94 = vmatpush1.msra.mxu0 0.0
    %95 = vmatprep.subr.mxu0 0.0
    %96 = vmatpush1.msra.mxu0 0.0
    %97 = vmatprep.subr.mxu0 0.0
    %98 = vmatpush1.msra.mxu0 0.0
    %99 = vmatprep.subr.mxu0 0.0
    %100 = vmatpush1.msra.mxu0 0.0
    %101 = vmatprep.subr.mxu0 0.0
    %102 = vmatpush1.msra.mxu0 0.0
    %103 = vmatprep.subr.mxu0 0.0
    %104 = vmatpush1.msra.mxu0 %v58
    %105 = vmatprep.subr.mxu0 0.0
    %106 = vmatpush1.msra.mxu0 %v57
    %107 = vmatprep.subr.mxu0 0.0
    %108 = vmatpush1.msra.mxu0 %v56
    %109 = vmatprep.subr.mxu0 0.0
    %110 = vmatpush1.msra.mxu0 %v55
    %111 = vmatprep.subr.mxu0 0.0
    %112 = vmatpush2.msra.mxu0 0.0
    %113 = vmatprep.subr.mxu0 0.0
    %114 = vmatpush2.msra.mxu0 0.0
    %115 = vmatprep.subr.mxu0 0.0
    %116 = vmatpush2.msra.mxu0 0.0
    %117 = vmatprep.subr.mxu0 0.0
    %118 = vmatpush2.msra.mxu0 0.0
    %119 = vmatprep.subr.mxu0 0.0
    %120 = vmatpush2.msra.mxu0 0.0
    %121 = vmatprep.subr.mxu0 0.0
    %122 = vmatpush2.msra.mxu0 0.0
    %123 = vmatprep.subr.mxu0 0.0
    %124 = vmatpush2.msra.mxu0 0.0
    %125 = vmatprep.subr.mxu0 0.0
    %126 = vmatpush2.msra.mxu0 0.0
    %127 = vmatprep.subr.mxu0 0.0
    %128 = vmatpush2.msra.mxu0 0.0
    %129 = vmatprep.subr.mxu0 0.0
    %130 = vmatpush2.msra.mxu0 0.0
    %131 = vmatprep.subr.mxu0 0.0
    %132 = vmatpush2.msra.mxu0 0.0
    %133 = vmatprep.subr.mxu0 0.0
    %134 = vmatpush2.msra.mxu0 0.0
    %135 = vmatprep.subr.mxu0 0.0
    %136 = vmatpush2.msra.mxu0 0.0
    %137 = vmatprep.subr.mxu0 0.0
    %138 = vmatpush2.msra.mxu0 0.0
    %139 = vmatprep.subr.mxu0 0.0
    %140 = vmatpush2.msra.mxu0 0.0
    %141 = vmatprep.subr.mxu0 0.0
    %142 = vmatpush2.msra.mxu0 0.0
    %143 = vmatprep.mubr.f32.mxu0 0.0
    %144 = vmatmul.mubr.f32.gmra.mxu0 %v68
    %v145 = vpop.f32.mrf.mxu0
    %v146 = vadd.f32 %v64, %v145
    %v147 = vpop.f32.mrf.mxu0
    %148 = vmatprep.mubr.f32.mxu0 0.0
    %149 = vmatmul.mubr.f32.gmra.mxu0 %v71
    %v150 = vpop.f32.mrf.mxu0
    %v151 = vadd.f32 %v64, %v150
    %v152 = vpop.f32.mrf.mxu0
    %153 = vmatprep.mubr.f32.mxu0 0.0
    %154 = vmatmul.mubr.f32.gmra.mxu0 %v74
    %v155 = vpop.f32.mrf.mxu0
    %v156 = vadd.f32 %v64, %v155
    %v157 = vpop.f32.mrf.mxu0
    %158 = vmatprep.mubr.f32.mxu0 0.0
    %159 = vmatmul.mubr.f32.gmra.mxu0 %v77
    %v160 = vpop.f32.mrf.mxu0
    %v161 = vadd.f32 %v64, %v160
    %v162 = vpop.f32.mrf.mxu0
    %163 = vdwg.mxu0
    %v164 = vtanh.pop %v146
    %v165 = vtanh.pop %v151
    %v166 = vtanh.pop %v156
    %v167 = vtanh.pop %v161
    %v168 = vld [vmem:[%s4] sm:$0xff]
    %v169 = vld [vmem:[%s4 + $0x8] sm:$0xff]
    %v170 = vld [vmem:[%s5] sm:$0x1]
    %v172 = vlaneseq
    %v173 = vshrl.u32 %v172, 7
    %v174 = vsub.s32 0, %v173
    %v175 = vrot.slane %v170, %v174
    %vm177 = vcmask 130048
    %v179 = vsel %vm177, %v164, 0
    %v182 = vsel %vm177, %v165, 0
    %v185 = vsel %vm177, %v166, 0
    %v188 = vsel %vm177, %v167, 0
    %190 = vmatprep.subr.mxu0 0.0
    %191 = vmatpush1.msra.mxu0 0.0
    %192 = vmatprep.subr.mxu0 0.0
    %193 = vmatpush1.msra.mxu0 0.0
    %194 = vmatprep.subr.mxu0 0.0
    %195 = vmatpush1.msra.mxu0 0.0
    %196 = vmatprep.subr.mxu0 0.0
    %197 = vmatpush1.msra.mxu0 0.0
    %198 = vmatprep.subr.mxu0 0.0
    %199 = vmatpush1.msra.mxu0 0.0
    %200 = vmatprep.subr.mxu0 0.0
    %201 = vmatpush1.msra.mxu0 0.0
    %202 = vmatprep.subr.mxu0 0.0
    %203 = vmatpush1.msra.mxu0 0.0
    %204 = vmatprep.subr.mxu0 0.0
    %205 = vmatpush1.msra.mxu0 0.0
    %206 = vmatprep.subr.mxu0 0.0
    %207 = vmatpush1.msra.mxu0 0.0
    %208 = vmatprep.subr.mxu0 0.0
    %209 = vmatpush1.msra.mxu0 0.0
    %210 = vmatprep.subr.mxu0 0.0
    %211 = vmatpush1.msra.mxu0 0.0
    %212 = vmatprep.subr.mxu0 0.0
    %213 = vmatpush1.msra.mxu0 0.0
    %214 = vmatprep.subr.mxu0 0.0
    %215 = vmatpush1.msra.mxu0 0.0
    %216 = vmatprep.subr.mxu0 0.0
    %217 = vmatpush1.msra.mxu0 0.0
    %218 = vmatprep.subr.mxu0 0.0
    %219 = vmatpush1.msra.mxu0 %v169
    %220 = vmatprep.subr.mxu0 0.0
    %221 = vmatpush1.msra.mxu0 %v168
    %222 = vmatprep.subr.mxu0 0.0
    %223 = vmatpush2.msra.mxu0 0.0
    %224 = vmatprep.subr.mxu0 0.0
    %225 = vmatpush2.msra.mxu0 0.0
    %226 = vmatprep.subr.mxu0 0.0
    %227 = vmatpush2.msra.mxu0 0.0
    %228 = vmatprep.subr.mxu0 0.0
    %229 = vmatpush2.msra.mxu0 0.0
    %230 = vmatprep.subr.mxu0 0.0
    %231 = vmatpush2.msra.mxu0 0.0
    %232 = vmatprep.subr.mxu0 0.0
    %233 = vmatpush2.msra.mxu0 0.0
    %234 = vmatprep.subr.mxu0 0.0
    %235 = vmatpush2.msra.mxu0 0.0
    %236 = vmatprep.subr.mxu0 0.0
    %237 = vmatpush2.msra.mxu0 0.0
    %238 = vmatprep.subr.mxu0 0.0
    %239 = vmatpush2.msra.mxu0 0.0
    %240 = vmatprep.subr.mxu0 0.0
    %241 = vmatpush2.msra.mxu0 0.0
    %242 = vmatprep.subr.mxu0 0.0
    %243 = vmatpush2.msra.mxu0 0.0
    %244 = vmatprep.subr.mxu0 0.0
    %245 = vmatpush2.msra.mxu0 0.0
    %246 = vmatprep.subr.mxu0 0.0
    %247 = vmatpush2.msra.mxu0 0.0
    %248 = vmatprep.subr.mxu0 0.0
    %249 = vmatpush2.msra.mxu0 0.0
    %250 = vmatprep.subr.mxu0 0.0
    %251 = vmatpush2.msra.mxu0 0.0
    %252 = vmatprep.subr.mxu0 0.0
    %253 = vmatpush2.msra.mxu0 0.0
    %254 = vmatprep.mubr.f32.mxu0 0.0
    %255 = vmatmul.mubr.f32.gmra.mxu0 %v179
    %v256 = vpop.f32.mrf.mxu0
    %v257 = vadd.f32 %v175, %v256
    %v258 = vpop.f32.mrf.mxu0
    %259 = vmatprep.mubr.f32.mxu0 0.0
    %260 = vmatmul.mubr.f32.gmra.mxu0 %v182
    %v261 = vpop.f32.mrf.mxu0
    %v262 = vadd.f32 %v175, %v261
    %v263 = vpop.f32.mrf.mxu0
    %264 = vmatprep.mubr.f32.mxu0 0.0
    %265 = vmatmul.mubr.f32.gmra.mxu0 %v185
    %v266 = vpop.f32.mrf.mxu0
    %v267 = vadd.f32 %v175, %v266
    %v268 = vpop.f32.mrf.mxu0
    %269 = vmatprep.mubr.f32.mxu0 0.0
    %270 = vmatmul.mubr.f32.gmra.mxu0 %v188
    %v271 = vpop.f32.mrf.mxu0
    %v272 = vadd.f32 %v175, %v271
    %v273 = vpop.f32.mrf.mxu0
    %274 = vdwg.mxu0
    %v275 = vtanh.pop %v257
    %v276 = vtanh.pop %v262
    %v277 = vtanh.pop %v267
    %v278 = vtanh.pop %v272
    %v279 = vld [vmem:[%s0] sm:$0xff]
    %v280 = vld [vmem:[%s0 + $0x8] sm:$0xff]
    %v281 = vld [vmem:[%s0 + $0x10] sm:$0xff]
    %v282 = vld [vmem:[%s0 + $0x18] sm:$0xff]
    %v283 = vadd.f32 %v279, %v275
    %v284 = vadd.f32 %v280, %v276
    %v285 = vadd.f32 %v281, %v277
    %v286 = vadd.f32 %v282, %v278
    %v287 = vsel %vm66, %v283, 0.0
    %288 = vadd.xlane.f32.xlu0 %v287
    %v289 = vpop.xlane.xlu0 %288
    %v290 = vsel %vm66, %v284, 0.0
    %291 = vadd.xlane.f32.xlu0 %v290
    %v292 = vpop.xlane.xlu0 %291
    %v293 = vsel %vm66, %v285, 0.0
    %294 = vadd.xlane.f32.xlu0 %v293
    %v295 = vpop.xlane.xlu0 %294
    %v296 = vsel %vm66, %v286, 0.0
    %297 = vadd.xlane.f32.xlu0 %v296
    %v298 = vpop.xlane.xlu0 %297
    %v299 = vrcp.pop 32.0
    %v300 = vmul.f32 %v289, %v299
    %v301 = vmul.f32 %v292, %v299
    %v302 = vmul.f32 %v295, %v299
    %v303 = vmul.f32 %v298, %v299
    %v304 = vsub.f32 %v283, %v300
    %v305 = vsub.f32 %v284, %v301
    %v306 = vsub.f32 %v285, %v302
    %v307 = vsub.f32 %v286, %v303
    %v308 = vmul.f32 %v304, %v304
    %v309 = vmul.f32 %v305, %v305
    %v310 = vmul.f32 %v306, %v306
    %v311 = vmul.f32 %v307, %v307
    %v312 = vsel %vm66, %v308, 0.0
    %313 = vadd.xlane.f32.xlu0 %v312
    %v314 = vpop.xlane.xlu0 %313
    %v315 = vsel %vm66, %v309, 0.0
    %316 = vadd.xlane.f32.xlu0 %v315
    %v317 = vpop.xlane.xlu0 %316
    %v318 = vsel %vm66, %v310, 0.0
    %319 = vadd.xlane.f32.xlu0 %v318
    %v320 = vpop.xlane.xlu0 %319
    %v321 = vsel %vm66, %v311, 0.0
    %322 = vadd.xlane.f32.xlu0 %v321
    %v323 = vpop.xlane.xlu0 %322
    %v324 = vmul.f32 %v314, %v299
    %v325 = vmul.f32 %v317, %v299
    %v326 = vmul.f32 %v320, %v299
    %v327 = vmul.f32 %v323, %v299
    %v328 = vadd.f32 %v324, 1e-05
    %v329 = vadd.f32 %v325, 1e-05
    %v330 = vadd.f32 %v326, 1e-05
    %v331 = vadd.f32 %v327, 1e-05
    %v332 = vrsqrt.pop %v328
    %v333 = vrsqrt.pop %v329
    %v334 = vrsqrt.pop %v330
    %v335 = vrsqrt.pop %v331
    %v336 = vmul.f32 %v304, %v332
    %v337 = vmul.f32 %v305, %v333
    %v338 = vmul.f32 %v306, %v334
    %v339 = vmul.f32 %v307, %v335
    %v340 = vld [vmem:[%s6] sm:$0x1]
    %v342 = vlaneseq
    %v343 = vshrl.u32 %v342, 7
    %v344 = vsub.s32 0, %v343
    %v345 = vrot.slane %v340, %v344
    %v347 = vmul.f32 %v336, %v345
    %v348 = vmul.f32 %v337, %v345
    %v349 = vmul.f32 %v338, %v345
    %v350 = vmul.f32 %v339, %v345
    %v351 = vld [vmem:[%s7] sm:$0x1]
    %v353 = vlaneseq
    %v354 = vshrl.u32 %v353, 7
    %v355 = vsub.s32 0, %v354
    %v356 = vrot.slane %v351, %v355
    %v358 = vadd.f32 %v347, %v356
    %v359 = vadd.f32 %v348, %v356
    %v360 = vadd.f32 %v349, %v356
    %v361 = vadd.f32 %v350, %v356
    %v362 = vld [vmem:[%s13] sm:$0xff]
    %v363 = vld [vmem:[%s13 + $0x8] sm:$0xff]
    %v364 = vld [vmem:[%s13 + $0x10] sm:$0xff]
    %v365 = vld [vmem:[%s13 + $0x18] sm:$0xff]
    %v367 = vsel %vm66, %v358, 0
    %v370 = vsel %vm66, %v359, 0
    %v373 = vsel %vm66, %v360, 0
    %v376 = vsel %vm66, %v361, 0
    %378 = vmatprep.subr.mxu0 0.0
    %379 = vmatpush1.msra.mxu0 0.0
    %380 = vmatprep.subr.mxu0 0.0
    %381 = vmatpush1.msra.mxu0 0.0
    %382 = vmatprep.subr.mxu0 0.0
    %383 = vmatpush1.msra.mxu0 0.0
    %384 = vmatprep.subr.mxu0 0.0
    %385 = vmatpush1.msra.mxu0 0.0
    %386 = vmatprep.subr.mxu0 0.0
    %387 = vmatpush1.msra.mxu0 0.0
    %388 = vmatprep.subr.mxu0 0.0
    %389 = vmatpush1.msra.mxu0 0.0
    %390 = vmatprep.subr.mxu0 0.0
    %391 = vmatpush1.msra.mxu0 0.0
    %392 = vmatprep.subr.mxu0 0.0
    %393 = vmatpush1.msra.mxu0 0.0
    %394 = vmatprep.subr.mxu0 0.0
    %395 = vmatpush1.msra.mxu0 0.0
    %396 = vmatprep.subr.mxu0 0.0
    %397 = vmatpush1.msra.mxu0 0.0
    %398 = vmatprep.subr.mxu0 0.0
    %399 = vmatpush1.msra.mxu0 0.0
    %400 = vmatprep.subr.mxu0 0.0
    %401 = vmatpush1.msra.mxu0 0.0
    %402 = vmatprep.subr.mxu0 0.0
    %403 = vmatpush1.msra.mxu0 %v365
    %404 = vmatprep.subr.mxu0 0.0
    %405 = vmatpush1.msra.mxu0 %v364
    %406 = vmatprep.subr.mxu0 0.0
    %407 = vmatpush1.msra.mxu0 %v363
    %408 = vmatprep.subr.mxu0 0.0
    %409 = vmatpush1.msra.mxu0 %v362
    %410 = vmatprep.subr.mxu0 0.0
    %411 = vmatpush2.msra.mxu0 0.0
    %412 = vmatprep.subr.mxu0 0.0
    %413 = vmatpush2.msra.mxu0 0.0
    %414 = vmatprep.subr.mxu0 0.0
    %415 = vmatpush2.msra.mxu0 0.0
    %416 = vmatprep.subr.mxu0 0.0
    %417 = vmatpush2.msra.mxu0 0.0
    %418 = vmatprep.subr.mxu0 0.0
    %419 = vmatpush2.msra.mxu0 0.0
    %420 = vmatprep.subr.mxu0 0.0
    %421 = vmatpush2.msra.mxu0 0.0
    %422 = vmatprep.subr.mxu0 0.0
    %423 = vmatpush2.msra.mxu0 0.0
    %424 = vmatprep.subr.mxu0 0.0
    %425 = vmatpush2.msra.mxu0 0.0
    %426 = vmatprep.subr.mxu0 0.0
    %427 = vmatpush2.msra.mxu0 0.0
    %428 = vmatprep.subr.mxu0 0.0
    %429 = vmatpush2.msra.mxu0 0.0
    %430 = vmatprep.subr.mxu0 0.0
    %431 = vmatpush2.msra.mxu0 0.0
    %432 = vmatprep.subr.mxu0 0.0
    %433 = vmatpush2.msra.mxu0 0.0
    %434 = vmatprep.subr.mxu0 0.0
    %435 = vmatpush2.msra.mxu0 0.0
    %436 = vmatprep.subr.mxu0 0.0
    %437 = vmatpush2.msra.mxu0 0.0
    %438 = vmatprep.subr.mxu0 0.0
    %439 = vmatpush2.msra.mxu0 0.0
    %440 = vmatprep.subr.mxu0 0.0
    %441 = vmatpush2.msra.mxu0 0.0
    %442 = vmatprep.mubr.f32.mxu0 0.0
    %443 = vmatmul.mubr.f32.gmra.mxu0 %v367
    %v444 = vpop.f32.mrf.mxu0
    %v445 = vadd.f32 0.0, %v444
    %v446 = vpop.f32.mrf.mxu0
    %447 = vmatprep.mubr.f32.mxu0 0.0
    %448 = vmatmul.mubr.f32.gmra.mxu0 %v370
    %v449 = vpop.f32.mrf.mxu0
    %v450 = vadd.f32 0.0, %v449
    %v451 = vpop.f32.mrf.mxu0
    %452 = vmatprep.mubr.f32.mxu0 0.0
    %453 = vmatmul.mubr.f32.gmra.mxu0 %v373
    %v454 = vpop.f32.mrf.mxu0
    %v455 = vadd.f32 0.0, %v454
    %v456 = vpop.f32.mrf.mxu0
    %457 = vmatprep.mubr.f32.mxu0 0.0
    %458 = vmatmul.mubr.f32.gmra.mxu0 %v376
    %v459 = vpop.f32.mrf.mxu0
    %v460 = vadd.f32 0.0, %v459
    %v461 = vpop.f32.mrf.mxu0
    %462 = vdwg.mxu0
    %v463 = vmul.f32 %v445, 0.5
    %v464 = vmul.f32 %v450, 0.5
    %v465 = vmul.f32 %v455, 0.5
    %v466 = vmul.f32 %v460, 0.5
    %v467 = vmul.f32 %v445, 0.70710677
    %v468 = vmul.f32 %v450, 0.70710677
    %v469 = vmul.f32 %v455, 0.70710677
    %v470 = vmul.f32 %v460, 0.70710677
    %v471 = verf.f32.pop %v467
    %v472 = verf.f32.pop %v468
    %v473 = verf.f32.pop %v469
    %v474 = verf.f32.pop %v470
    %v475 = vadd.f32 %v471, 1.0
    %v476 = vadd.f32 %v472, 1.0
    %v477 = vadd.f32 %v473, 1.0
    %v478 = vadd.f32 %v474, 1.0
    %v479 = vmul.f32 %v463, %v475
    %v480 = vmul.f32 %v464, %v476
    %v481 = vmul.f32 %v465, %v477
    %v482 = vmul.f32 %v466, %v478
    %v483 = vld [vmem:[%s14] sm:$0xff]
    %v484 = vld [vmem:[%s14 + $0x8] sm:$0xff]
    %v485 = vld [vmem:[%s14 + $0x10] sm:$0xff]
    %v486 = vld [vmem:[%s14 + $0x18] sm:$0xff]
    %v487 = vld [vmem:[%s14 + $0x20] sm:$0xff]
    %v488 = vld [vmem:[%s14 + $0x28] sm:$0xff]
    %v489 = vld [vmem:[%s14 + $0x30] sm:$0xff]
    %v490 = vld [vmem:[%s14 + $0x38] sm:$0xff]
    %vm491 = vcmask 523264
    %v493 = vsel %vm491, %v479, 0
    %v496 = vsel %vm491, %v480, 0
    %v499 = vsel %vm491, %v481, 0
    %v502 = vsel %vm491, %v482, 0
    %504 = vmatprep.subr.mxu0 0.0
    %505 = vmatpush1.msra.mxu0 0.0
    %506 = vmatprep.subr.mxu0 0.0
    %507 = vmatpush1.msra.mxu0 0.0
    %508 = vmatprep.subr.mxu0 0.0
    %509 = vmatpush1.msra.mxu0 0.0
    %510 = vmatprep.subr.mxu0 0.0
    %511 = vmatpush1.msra.mxu0 0.0
    %512 = vmatprep.subr.mxu0 0.0
    %513 = vmatpush1.msra.mxu0 0.0
    %514 = vmatprep.subr.mxu0 0.0
    %515 = vmatpush1.msra.mxu0 0.0
    %516 = vmatprep.subr.mxu0 0.0
    %517 = vmatpush1.msra.mxu0 0.0
    %518 = vmatprep.subr.mxu0 0.0
    %519 = vmatpush1.msra.mxu0 0.0
    %520 = vmatprep.subr.mxu0 0.0
    %521 = vmatpush1.msra.mxu0 %v490
    %522 = vmatprep.subr.mxu0 0.0
    %523 = vmatpush1.msra.mxu0 %v489
    %524 = vmatprep.subr.mxu0 0.0
    %525 = vmatpush1.msra.mxu0 %v488
    %526 = vmatprep.subr.mxu0 0.0
    %527 = vmatpush1.msra.mxu0 %v487
    %528 = vmatprep.subr.mxu0 0.0
    %529 = vmatpush1.msra.mxu0 %v486
    %530 = vmatprep.subr.mxu0 0.0
    %531 = vmatpush1.msra.mxu0 %v485
    %532 = vmatprep.subr.mxu0 0.0
    %533 = vmatpush1.msra.mxu0 %v484
    %534 = vmatprep.subr.mxu0 0.0
    %535 = vmatpush1.msra.mxu0 %v483
    %536 = vmatprep.subr.mxu0 0.0
    %537 = vmatpush2.msra.mxu0 0.0
    %538 = vmatprep.subr.mxu0 0.0
    %539 = vmatpush2.msra.mxu0 0.0
    %540 = vmatprep.subr.mxu0 0.0
    %541 = vmatpush2.msra.mxu0 0.0
    %542 = vmatprep.subr.mxu0 0.0
    %543 = vmatpush2.msra.mxu0 0.0
    %544 = vmatprep.subr.mxu0 0.0
    %545 = vmatpush2.msra.mxu0 0.0
    %546 = vmatprep.subr.mxu0 0.0
    %547 = vmatpush2.msra.mxu0 0.0
    %548 = vmatprep.subr.mxu0 0.0
    %549 = vmatpush2.msra.mxu0 0.0
    %550 = vmatprep.subr.mxu0 0.0
    %551 = vmatpush2.msra.mxu0 0.0
    %552 = vmatprep.subr.mxu0 0.0
    %553 = vmatpush2.msra.mxu0 0.0
    %554 = vmatprep.subr.mxu0 0.0
    %555 = vmatpush2.msra.mxu0 0.0
    %556 = vmatprep.subr.mxu0 0.0
    %557 = vmatpush2.msra.mxu0 0.0
    %558 = vmatprep.subr.mxu0 0.0
    %559 = vmatpush2.msra.mxu0 0.0
    %560 = vmatprep.subr.mxu0 0.0
    %561 = vmatpush2.msra.mxu0 0.0
    %562 = vmatprep.subr.mxu0 0.0
    %563 = vmatpush2.msra.mxu0 0.0
    %564 = vmatprep.subr.mxu0 0.0
    %565 = vmatpush2.msra.mxu0 0.0
    %566 = vmatprep.subr.mxu0 0.0
    %567 = vmatpush2.msra.mxu0 0.0
    %568 = vmatprep.mubr.f32.mxu0 0.0
    %569 = vmatmul.mubr.f32.gmra.mxu0 %v493
    %v570 = vpop.f32.mrf.mxu0
    %v571 = vadd.f32 0.0, %v570
    %v572 = vpop.f32.mrf.mxu0
    %573 = vmatprep.mubr.f32.mxu0 0.0
    %574 = vmatmul.mubr.f32.gmra.mxu0 %v496
    %v575 = vpop.f32.mrf.mxu0
    %v576 = vadd.f32 0.0, %v575
    %v577 = vpop.f32.mrf.mxu0
    %578 = vmatprep.mubr.f32.mxu0 0.0
    %579 = vmatmul.mubr.f32.gmra.mxu0 %v499
    %v580 = vpop.f32.mrf.mxu0
    %v581 = vadd.f32 0.0, %v580
    %v582 = vpop.f32.mrf.mxu0
    %583 = vmatprep.mubr.f32.mxu0 0.0
    %584 = vmatmul.mubr.f32.gmra.mxu0 %v502
    %v585 = vpop.f32.mrf.mxu0
    %v586 = vadd.f32 0.0, %v585
    %v587 = vpop.f32.mrf.mxu0
    %588 = vdwg.mxu0
    %v589 = vld [vmem:[%s8] sm:$0xff]
    %v590 = vld [vmem:[%s8 + $0x8] sm:$0xff]
    %v591 = vld [vmem:[%s8 + $0x10] sm:$0xff]
    %v592 = vld [vmem:[%s8 + $0x18] sm:$0xff]
    %v593 = vadd.f32 %v283, %v571
    %v594 = vadd.f32 %v284, %v576
    %v595 = vadd.f32 %v285, %v581
    %v596 = vadd.f32 %v286, %v586
    %v597 = vld [vmem:[%s9] sm:$0xff]
    %v598 = vld [vmem:[%s9 + $0x8] sm:$0xff]
    %v599 = vld [vmem:[%s9 + $0x10] sm:$0xff]
    %v600 = vld [vmem:[%s9 + $0x18] sm:$0xff]
    %601 = vmatprep.subr.mxu0 0.0
    %602 = vmatpush1.msra.mxu0 0.0
    %603 = vmatprep.subr.mxu0 0.0
    %604 = vmatpush1.msra.mxu0 0.0
    %605 = vmatprep.subr.mxu0 0.0
    %606 = vmatpush1.msra.mxu0 0.0
    %607 = vmatprep.subr.mxu0 0.0
    %608 = vmatpush1.msra.mxu0 0.0
    %609 = vmatprep.subr.mxu0 0.0
    %610 = vmatpush1.msra.mxu0 0.0
    %611 = vmatprep.subr.mxu0 0.0
    %612 = vmatpush1.msra.mxu0 0.0
    %613 = vmatprep.subr.mxu0 0.0
    %614 = vmatpush1.msra.mxu0 0.0
    %615 = vmatprep.subr.mxu0 0.0
    %616 = vmatpush1.msra.mxu0 0.0
    %617 = vmatprep.subr.mxu0 0.0
    %618 = vmatpush1.msra.mxu0 0.0
    %619 = vmatprep.subr.mxu0 0.0
    %620 = vmatpush1.msra.mxu0 0.0
    %621 = vmatprep.subr.mxu0 0.0
    %622 = vmatpush1.msra.mxu0 0.0
    %623 = vmatprep.subr.mxu0 0.0
    %624 = vmatpush1.msra.mxu0 0.0
    %625 = vmatprep.subr.mxu0 0.0
    %626 = vmatpush1.msra.mxu0 %v600
    %627 = vmatprep.subr.mxu0 0.0
    %628 = vmatpush1.msra.mxu0 %v599
    %629 = vmatprep.subr.mxu0 0.0
    %630 = vmatpush1.msra.mxu0 %v598
    %631 = vmatprep.subr.mxu0 0.0
    %632 = vmatpush1.msra.mxu0 %v597
    %633 = vmatprep.subr.mxu0 0.0
    %634 = vmatpush2.msra.mxu0 0.0
    %635 = vmatprep.subr.mxu0 0.0
    %636 = vmatpush2.msra.mxu0 0.0
    %637 = vmatprep.subr.mxu0 0.0
    %638 = vmatpush2.msra.mxu0 0.0
    %639 = vmatprep.subr.mxu0 0.0
    %640 = vmatpush2.msra.mxu0 0.0
    %641 = vmatprep.subr.mxu0 0.0
    %642 = vmatpush2.msra.mxu0 0.0
    %643 = vmatprep.subr.mxu0 0.0
    %644 = vmatpush2.msra.mxu0 0.0
    %645 = vmatprep.subr.mxu0 0.0
    %646 = vmatpush2.msra.mxu0 0.0
    %647 = vmatprep.subr.mxu0 0.0
    %648 = vmatpush2.msra.mxu0 0.0
    %649 = vmatprep.subr.mxu0 0.0
    %650 = vmatpush2.msra.mxu0 0.0
    %651 = vmatprep.subr.mxu0 0.0
    %652 = vmatpush2.msra.mxu0 0.0
    %653 = vmatprep.subr.mxu0 0.0
    %654 = vmatpush2.msra.mxu0 0.0
    %655 = vmatprep.subr.mxu0 0.0
    %656 = vmatpush2.msra.mxu0 0.0
    %657 = vmatprep.subr.mxu0 0.0
    %658 = vmatpush2.msra.mxu0 0.0
    %659 = vmatprep.subr.mxu0 0.0
    %660 = vmatpush2.msra.mxu0 0.0
    %661 = vmatprep.subr.mxu0 0.0
    %662 = vmatpush2.msra.mxu0 0.0
    %663 = vmatprep.subr.mxu0 0.0
    %664 = vmatpush2.msra.mxu0 0.0
    %665 = vmatprep.mubr.f32.mxu0 0.0
    %666 = vmatmul.mubr.f32.gmra.mxu0 %v367
    %v667 = vpop.f32.mrf.mxu0
    %v668 = vadd.f32 0.0, %v667
    %v669 = vpop.f32.mrf.mxu0
    %670 = vmatprep.mubr.f32.mxu0 0.0
    %671 = vmatmul.mubr.f32.gmra.mxu0 %v370
    %v672 = vpop.f32.mrf.mxu0
    %v673 = vadd.f32 0.0, %v672
    %v674 = vpop.f32.mrf.mxu0
    %675 = vmatprep.mubr.f32.mxu0 0.0
    %676 = vmatmul.mubr.f32.gmra.mxu0 %v373
    %v677 = vpop.f32.mrf.mxu0
    %v678 = vadd.f32 0.0, %v677
    %v679 = vpop.f32.mrf.mxu0
    %680 = vmatprep.mubr.f32.mxu0 0.0
    %681 = vmatmul.mubr.f32.gmra.mxu0 %v376
    %v682 = vpop.f32.mrf.mxu0
    %v683 = vadd.f32 0.0, %v682
    %v684 = vpop.f32.mrf.mxu0
    %685 = vdwg.mxu0
    %v686 = vld [vmem:[%s10] sm:$0xff]
    %v687 = vld [vmem:[%s10 + $0x8] sm:$0xff]
    %v688 = vld [vmem:[%s10 + $0x10] sm:$0xff]
    %v689 = vld [vmem:[%s10 + $0x18] sm:$0xff]
    %690 = vmatprep.subr.mxu0 0.0
    %691 = vmatpush1.msra.mxu0 0.0
    %692 = vmatprep.subr.mxu0 0.0
    %693 = vmatpush1.msra.mxu0 0.0
    %694 = vmatprep.subr.mxu0 0.0
    %695 = vmatpush1.msra.mxu0 0.0
    %696 = vmatprep.subr.mxu0 0.0
    %697 = vmatpush1.msra.mxu0 0.0
    %698 = vmatprep.subr.mxu0 0.0
    %699 = vmatpush1.msra.mxu0 0.0
    %700 = vmatprep.subr.mxu0 0.0
    %701 = vmatpush1.msra.mxu0 0.0
    %702 = vmatprep.subr.mxu0 0.0
    %703 = vmatpush1.msra.mxu0 0.0
    %704 = vmatprep.subr.mxu0 0.0
    %705 = vmatpush1.msra.mxu0 0.0
    %706 = vmatprep.subr.mxu0 0.0
    %707 = vmatpush1.msra.mxu0 0.0
    %708 = vmatprep.subr.mxu0 0.0
    %709 = vmatpush1.msra.mxu0 0.0
    %710 = vmatprep.subr.mxu0 0.0
    %711 = vmatpush1.msra.mxu0 0.0
    %712 = vmatprep.subr.mxu0 0.0
    %713 = vmatpush1.msra.mxu0 0.0
    %714 = vmatprep.subr.mxu0 0.0
    %715 = vmatpush1.msra.mxu0 %v689
    %716 = vmatprep.subr.mxu0 0.0
    %717 = vmatpush1.msra.mxu0 %v688
    %718 = vmatprep.subr.mxu0 0.0
    %719 = vmatpush1.msra.mxu0 %v687
    %720 = vmatprep.subr.mxu0 0.0
    %721 = vmatpush1.msra.mxu0 %v686
    %722 = vmatprep.subr.mxu0 0.0
    %723 = vmatpush2.msra.mxu0 0.0
    %724 = vmatprep.subr.mxu0 0.0
    %725 = vmatpush2.msra.mxu0 0.0
    %726 = vmatprep.subr.mxu0 0.0
    %727 = vmatpush2.msra.mxu0 0.0
    %728 = vmatprep.subr.mxu0 0.0
    %729 = vmatpush2.msra.mxu0 0.0
    %730 = vmatprep.subr.mxu0 0.0
    %731 = vmatpush2.msra.mxu0 0.0
    %732 = vmatprep.subr.mxu0 0.0
    %733 = vmatpush2.msra.mxu0 0.0
    %734 = vmatprep.subr.mxu0 0.0
    %735 = vmatpush2.msra.mxu0 0.0
    %736 = vmatprep.subr.mxu0 0.0
    %737 = vmatpush2.msra.mxu0 0.0
    %738 = vmatprep.subr.mxu0 0.0
    %739 = vmatpush2.msra.mxu0 0.0
    %740 = vmatprep.subr.mxu0 0.0
    %741 = vmatpush2.msra.mxu0 0.0
    %742 = vmatprep.subr.mxu0 0.0
    %743 = vmatpush2.msra.mxu0 0.0
    %744 = vmatprep.subr.mxu0 0.0
    %745 = vmatpush2.msra.mxu0 0.0
    %746 = vmatprep.subr.mxu0 0.0
    %747 = vmatpush2.msra.mxu0 0.0
    %748 = vmatprep.subr.mxu0 0.0
    %749 = vmatpush2.msra.mxu0 0.0
    %750 = vmatprep.subr.mxu0 0.0
    %751 = vmatpush2.msra.mxu0 0.0
    %752 = vmatprep.subr.mxu0 0.0
    %753 = vmatpush2.msra.mxu0 0.0
    %754 = vmatprep.mubr.f32.mxu0 0.0
    %755 = vmatmul.mubr.f32.gmra.mxu0 %v367
    %v756 = vpop.f32.mrf.mxu0
    %v757 = vadd.f32 0.0, %v756
    %v758 = vpop.f32.mrf.mxu0
    %759 = vmatprep.mubr.f32.mxu0 0.0
    %760 = vmatmul.mubr.f32.gmra.mxu0 %v370
    %v761 = vpop.f32.mrf.mxu0
    %v762 = vadd.f32 0.0, %v761
    %v763 = vpop.f32.mrf.mxu0
    %764 = vmatprep.mubr.f32.mxu0 0.0
    %765 = vmatmul.mubr.f32.gmra.mxu0 %v373
    %v766 = vpop.f32.mrf.mxu0
    %v767 = vadd.f32 0.0, %v766
    %v768 = vpop.f32.mrf.mxu0
    %769 = vmatprep.mubr.f32.mxu0 0.0
    %770 = vmatmul.mubr.f32.gmra.mxu0 %v376
    %v771 = vpop.f32.mrf.mxu0
    %v772 = vadd.f32 0.0, %v771
    %v773 = vpop.f32.mrf.mxu0
    %774 = vdwg.mxu0
    %v775 = vld [vmem:[%s11] sm:$0xff]
    %v776 = vld [vmem:[%s11 + $0x8] sm:$0xff]
    %v777 = vld [vmem:[%s11 + $0x10] sm:$0xff]
    %v778 = vld [vmem:[%s11 + $0x18] sm:$0xff]
    %779 = vmatprep.subr.mxu0 0.0
    %780 = vmatpush1.msra.mxu0 0.0
    %781 = vmatprep.subr.mxu0 0.0
    %782 = vmatpush1.msra.mxu0 0.0
    %783 = vmatprep.subr.mxu0 0.0
    %784 = vmatpush1.msra.mxu0 0.0
    %785 = vmatprep.subr.mxu0 0.0
    %786 = vmatpush1.msra.mxu0 0.0
    %787 = vmatprep.subr.mxu0 0.0
    %788 = vmatpush1.msra.mxu0 0.0
    %789 = vmatprep.subr.mxu0 0.0
    %790 = vmatpush1.msra.mxu0 0.0
    %791 = vmatprep.subr.mxu0 0.0
    %792 = vmatpush1.msra.mxu0 0.0
    %793 = vmatprep.subr.mxu0 0.0
    %794 = vmatpush1.msra.mxu0 0.0
    %795 = vmatprep.subr.mxu0 0.0
    %796 = vmatpush1.msra.mxu0 0.0
    %797 = vmatprep.subr.mxu0 0.0
    %798 = vmatpush1.msra.mxu0 0.0
    %799 = vmatprep.subr.mxu0 0.0
    %800 = vmatpush1.msra.mxu0 0.0
    %801 = vmatprep.subr.mxu0 0.0
    %802 = vmatpush1.msra.mxu0 0.0
    %803 = vmatprep.subr.mxu0 0.0
    %804 = vmatpush1.msra.mxu0 %v778
    %805 = vmatprep.subr.mxu0 0.0
    %806 = vmatpush1.msra.mxu0 %v777
    %807 = vmatprep.subr.mxu0 0.0
    %808 = vmatpush1.msra.mxu0 %v776
    %809 = vmatprep.subr.mxu0 0.0
    %810 = vmatpush1.msra.mxu0 %v775
    %811 = vmatprep.subr.mxu0 0.0
    %812 = vmatpush2.msra.mxu0 0.0
    %813 = vmatprep.subr.mxu0 0.0
    %814 = vmatpush2.msra.mxu0 0.0
    %815 = vmatprep.subr.mxu0 0.0
    %816 = vmatpush2.msra.mxu0 0.0
    %817 = vmatprep.subr.mxu0 0.0
    %818 = vmatpush2.msra.mxu0 0.0
    %819 = vmatprep.subr.mxu0 0.0
    %820 = vmatpush2.msra.mxu0 0.0
    %821 = vmatprep.subr.mxu0 0.0
    %822 = vmatpush2.msra.mxu0 0.0
    %823 = vmatprep.subr.mxu0 0.0
    %824 = vmatpush2.msra.mxu0 0.0
    %825 = vmatprep.subr.mxu0 0.0
    %826 = vmatpush2.msra.mxu0 0.0
    %827 = vmatprep.subr.mxu0 0.0
    %828 = vmatpush2.msra.mxu0 0.0
    %829 = vmatprep.subr.mxu0 0.0
    %830 = vmatpush2.msra.mxu0 0.0
    %831 = vmatprep.subr.mxu0 0.0
    %832 = vmatpush2.msra.mxu0 0.0
    %833 = vmatprep.subr.mxu0 0.0
    %834 = vmatpush2.msra.mxu0 0.0
    %835 = vmatprep.subr.mxu0 0.0
    %836 = vmatpush2.msra.mxu0 0.0
    %837 = vmatprep.subr.mxu0 0.0
    %838 = vmatpush2.msra.mxu0 0.0
    %839 = vmatprep.subr.mxu0 0.0
    %840 = vmatpush2.msra.mxu0 0.0
    %841 = vmatprep.subr.mxu0 0.0
    %842 = vmatpush2.msra.mxu0 0.0
    %843 = vmatprep.mubr.f32.mxu0 0.0
    %844 = vmatmul.mubr.f32.gmra.mxu0 %v367
    %v845 = vpop.f32.mrf.mxu0
    %v846 = vadd.f32 0.0, %v845
    %v847 = vpop.f32.mrf.mxu0
    %848 = vmatprep.mubr.f32.mxu0 0.0
    %849 = vmatmul.mubr.f32.gmra.mxu0 %v370
    %v850 = vpop.f32.mrf.mxu0
    %v851 = vadd.f32 0.0, %v850
    %v852 = vpop.f32.mrf.mxu0
    %853 = vmatprep.mubr.f32.mxu0 0.0
    %854 = vmatmul.mubr.f32.gmra.mxu0 %v373
    %v855 = vpop.f32.mrf.mxu0
    %v856 = vadd.f32 0.0, %v855
    %v857 = vpop.f32.mrf.mxu0
    %858 = vmatprep.mubr.f32.mxu0 0.0
    %859 = vmatmul.mubr.f32.gmra.mxu0 %v376
    %v860 = vpop.f32.mrf.mxu0
    %v861 = vadd.f32 0.0, %v860
    %v862 = vpop.f32.mrf.mxu0
    %863 = vdwg.mxu0
    %v865 = vsel %vm177, %v668, 0
    %v868 = vsel %vm177, %v673, 0
    %v871 = vsel %vm177, %v678, 0
    %v874 = vsel %vm177, %v683, 0
    %v877 = vsel %vm177, %v757, 0
    %v880 = vsel %vm177, %v762, 0
    %v883 = vsel %vm177, %v767, 0
    %v886 = vsel %vm177, %v772, 0
    %888 = vmatprep.subr.mxu0 0.0
    %889 = vmatpush1.xpose.msra.mxu0 0.0
    %890 = vmatprep.subr.mxu0 0.0
    %891 = vmatpush1.xpose.msra.mxu0 0.0
    %892 = vmatprep.subr.mxu0 0.0
    %893 = vmatpush1.xpose.msra.mxu0 0.0
    %894 = vmatprep.subr.mxu0 0.0
    %895 = vmatpush1.xpose.msra.mxu0 0.0
    %896 = vmatprep.subr.mxu0 0.0
    %897 = vmatpush1.xpose.msra.mxu0 0.0
    %898 = vmatprep.subr.mxu0 0.0
    %899 = vmatpush1.xpose.msra.mxu0 0.0
    %900 = vmatprep.subr.mxu0 0.0
    %901 = vmatpush1.xpose.msra.mxu0 0.0
    %902 = vmatprep.subr.mxu0 0.0
    %903 = vmatpush1.xpose.msra.mxu0 0.0
    %904 = vmatprep.subr.mxu0 0.0
    %905 = vmatpush1.xpose.msra.mxu0 0.0
    %906 = vmatprep.subr.mxu0 0.0
    %907 = vmatpush1.xpose.msra.mxu0 0.0
    %908 = vmatprep.subr.mxu0 0.0
    %909 = vmatpush1.xpose.msra.mxu0 0.0
    %910 = vmatprep.subr.mxu0 0.0
    %911 = vmatpush1.xpose.msra.mxu0 0.0
    %912 = vmatprep.subr.mxu0 0.0
    %913 = vmatpush1.xpose.msra.mxu0 %v886
    %914 = vmatprep.subr.mxu0 0.0
    %915 = vmatpush1.xpose.msra.mxu0 %v883
    %916 = vmatprep.subr.mxu0 0.0
    %917 = vmatpush1.xpose.msra.mxu0 %v880
    %918 = vmatprep.subr.mxu0 0.0
    %919 = vmatpush1.xpose.msra.mxu0 %v877
    %920 = vmatprep.subr.mxu0 0.0
    %921 = vmatpush2.xpose.msra.mxu0 0.0
    %922 = vmatprep.subr.mxu0 0.0
    %923 = vmatpush2.xpose.msra.mxu0 0.0
    %924 = vmatprep.subr.mxu0 0.0
    %925 = vmatpush2.xpose.msra.mxu0 0.0
    %926 = vmatprep.subr.mxu0 0.0
    %927 = vmatpush2.xpose.msra.mxu0 0.0
    %928 = vmatprep.subr.mxu0 0.0
    %929 = vmatpush2.xpose.msra.mxu0 0.0
    %930 = vmatprep.subr.mxu0 0.0
    %931 = vmatpush2.xpose.msra.mxu0 0.0
    %932 = vmatprep.subr.mxu0 0.0
    %933 = vmatpush2.xpose.msra.mxu0 0.0
    %934 = vmatprep.subr.mxu0 0.0
    %935 = vmatpush2.xpose.msra.mxu0 0.0
    %936 = vmatprep.subr.mxu0 0.0
    %937 = vmatpush2.xpose.msra.mxu0 0.0
    %938 = vmatprep.subr.mxu0 0.0
    %939 = vmatpush2.xpose.msra.mxu0 0.0
    %940 = vmatprep.subr.mxu0 0.0
    %941 = vmatpush2.xpose.msra.mxu0 0.0
    %942 = vmatprep.subr.mxu0 0.0
    %943 = vmatpush2.xpose.msra.mxu0 0.0
    %944 = vmatprep.subr.mxu0 0.0
    %945 = vmatpush2.xpose.msra.mxu0 0.0
    %946 = vmatprep.subr.mxu0 0.0
    %947 = vmatpush2.xpose.msra.mxu0 0.0
    %948 = vmatprep.subr.mxu0 0.0
    %949 = vmatpush2.xpose.msra.mxu0 0.0
    %950 = vmatprep.subr.mxu0 0.0
    %951 = vmatpush2.xpose.msra.mxu0 0.0
    %952 = vmatprep.mubr.f32.mxu0 0.0
    %953 = vmatmul.mubr.f32.gmra.mxu0 %v865
    %v954 = vpop.f32.mrf.mxu0
    %v955 = vadd.f32 %v589, %v954
    %v956 = vpop.f32.mrf.mxu0
    %957 = vmatprep.mubr.f32.mxu0 0.0
    %958 = vmatmul.mubr.f32.gmra.mxu0 %v868
    %v959 = vpop.f32.mrf.mxu0
    %v960 = vadd.f32 %v590, %v959
    %v961 = vpop.f32.mrf.mxu0
    %962 = vmatprep.mubr.f32.mxu0 0.0
    %963 = vmatmul.mubr.f32.gmra.mxu0 %v871
    %v964 = vpop.f32.mrf.mxu0
    %v965 = vadd.f32 %v591, %v964
    %v966 = vpop.f32.mrf.mxu0
    %967 = vmatprep.mubr.f32.mxu0 0.0
    %968 = vmatmul.mubr.f32.gmra.mxu0 %v874
    %v969 = vpop.f32.mrf.mxu0
    %v970 = vadd.f32 %v592, %v969
    %v971 = vpop.f32.mrf.mxu0
    %972 = vdwg.mxu0
    %v973 = vsel %vm66, %v955, -inf
    %974 = vmax.xlane.f32.xlu0 %v973
    %v975 = vpop.xlane.xlu0 %974
    %v976 = vsel %vm66, %v960, -inf
    %977 = vmax.xlane.f32.xlu0 %v976
    %v978 = vpop.xlane.xlu0 %977
    %v979 = vsel %vm66, %v965, -inf
    %980 = vmax.xlane.f32.xlu0 %v979
    %v981 = vpop.xlane.xlu0 %980
    %v982 = vsel %vm66, %v970, -inf
    %983 = vmax.xlane.f32.xlu0 %v982
    %v984 = vpop.xlane.xlu0 %983
    %v985 = vsub.f32 %v955, %v975
    %v986 = vsub.f32 %v960, %v978
    %v987 = vsub.f32 %v965, %v981
    %v988 = vsub.f32 %v970, %v984
    %v989 = vmul.f32 %v985, 1.442695
    %v990 = vpow.pop %v989
    %v991 = vmul.f32 %v986, 1.442695
    %v992 = vpow.pop %v991
    %v993 = vmul.f32 %v987, 1.442695
    %v994 = vpow.pop %v993
    %v995 = vmul.f32 %v988, 1.442695
    %v996 = vpow.pop %v995
    %v997 = vsel %vm66, %v990, 0.0
    %998 = vadd.xlane.f32.xlu0 %v997
    %v999 = vpop.xlane.xlu0 %998
    %v1000 = vsel %vm66, %v992, 0.0
    %1001 = vadd.xlane.f32.xlu0 %v1000
    %v1002 = vpop.xlane.xlu0 %1001
    %v1003 = vsel %vm66, %v994, 0.0
    %1004 = vadd.xlane.f32.xlu0 %v1003
    %v1005 = vpop.xlane.xlu0 %1004
    %v1006 = vsel %vm66, %v996, 0.0
    %1007 = vadd.xlane.f32.xlu0 %v1006
    %v1008 = vpop.xlane.xlu0 %1007
    %v1009 = vrcp.pop %v999
    %v1010 = vrcp.pop %v1002
    %v1011 = vrcp.pop %v1005
    %v1012 = vrcp.pop %v1008
    %v1013 = vmul.f32 %v990, %v1009
    %v1014 = vmul.f32 %v992, %v1010
    %v1015 = vmul.f32 %v994, %v1011
    %v1016 = vmul.f32 %v996, %v1012
    %v1018 = vsel %vm66, %v1013, 0
    %v1021 = vsel %vm66, %v1014, 0
    %v1024 = vsel %vm66, %v1015, 0
    %v1027 = vsel %vm66, %v1016, 0
    %1029 = vmatprep.subr.mxu0 0.0
    %1030 = vmatpush1.msra.mxu0 0.0
    %1031 = vmatprep.subr.mxu0 0.0
    %1032 = vmatpush1.msra.mxu0 0.0
    %1033 = vmatprep.subr.mxu0 0.0
    %1034 = vmatpush1.msra.mxu0 0.0
    %1035 = vmatprep.subr.mxu0 0.0
    %1036 = vmatpush1.msra.mxu0 0.0
    %1037 = vmatprep.subr.mxu0 0.0
    %1038 = vmatpush1.msra.mxu0 0.0
    %1039 = vmatprep.subr.mxu0 0.0
    %1040 = vmatpush1.msra.mxu0 0.0
    %1041 = vmatprep.subr.mxu0 0.0
    %1042 = vmatpush1.msra.mxu0 0.0
    %1043 = vmatprep.subr.mxu0 0.0
    %1044 = vmatpush1.msra.mxu0 0.0
    %1045 = vmatprep.subr.mxu0 0.0
    %1046 = vmatpush1.msra.mxu0 0.0
    %1047 = vmatprep.subr.mxu0 0.0
    %1048 = vmatpush1.msra.mxu0 0.0
    %1049 = vmatprep.subr.mxu0 0.0
    %1050 = vmatpush1.msra.mxu0 0.0
    %1051 = vmatprep.subr.mxu0 0.0
    %1052 = vmatpush1.msra.mxu0 0.0
    %1053 = vmatprep.subr.mxu0 0.0
    %1054 = vmatpush1.msra.mxu0 %v861
    %1055 = vmatprep.subr.mxu0 0.0
    %1056 = vmatpush1.msra.mxu0 %v856
    %1057 = vmatprep.subr.mxu0 0.0
    %1058 = vmatpush1.msra.mxu0 %v851
    %1059 = vmatprep.subr.mxu0 0.0
    %1060 = vmatpush1.msra.mxu0 %v846
    %1061 = vmatprep.subr.mxu0 0.0
    %1062 = vmatpush2.msra.mxu0 0.0
    %1063 = vmatprep.subr.mxu0 0.0
    %1064 = vmatpush2.msra.mxu0 0.0
    %1065 = vmatprep.subr.mxu0 0.0
    %1066 = vmatpush2.msra.mxu0 0.0
    %1067 = vmatprep.subr.mxu0 0.0
    %1068 = vmatpush2.msra.mxu0 0.0
    %1069 = vmatprep.subr.mxu0 0.0
    %1070 = vmatpush2.msra.mxu0 0.0
    %1071 = vmatprep.subr.mxu0 0.0
    %1072 = vmatpush2.msra.mxu0 0.0
    %1073 = vmatprep.subr.mxu0 0.0
    %1074 = vmatpush2.msra.mxu0 0.0
    %1075 = vmatprep.subr.mxu0 0.0
    %1076 = vmatpush2.msra.mxu0 0.0
    %1077 = vmatprep.subr.mxu0 0.0
    %1078 = vmatpush2.msra.mxu0 0.0
    %1079 = vmatprep.subr.mxu0 0.0
    %1080 = vmatpush2.msra.mxu0 0.0
    %1081 = vmatprep.subr.mxu0 0.0
    %1082 = vmatpush2.msra.mxu0 0.0
    %1083 = vmatprep.subr.mxu0 0.0
    %1084 = vmatpush2.msra.mxu0 0.0
    %1085 = vmatprep.subr.mxu0 0.0
    %1086 = vmatpush2.msra.mxu0 0.0
    %1087 = vmatprep.subr.mxu0 0.0
    %1088 = vmatpush2.msra.mxu0 0.0
    %1089 = vmatprep.subr.mxu0 0.0
    %1090 = vmatpush2.msra.mxu0 0.0
    %1091 = vmatprep.subr.mxu0 0.0
    %1092 = vmatpush2.msra.mxu0 0.0
    %1093 = vmatprep.mubr.f32.mxu0 0.0
    %1094 = vmatmul.mubr.f32.gmra.mxu0 %v1018
    %v1095 = vpop.f32.mrf.mxu0
    %v1096 = vadd.f32 0.0, %v1095
    %v1097 = vpop.f32.mrf.mxu0
    %1098 = vmatprep.mubr.f32.mxu0 0.0
    %1099 = vmatmul.mubr.f32.gmra.mxu0 %v1021
    %v1100 = vpop.f32.mrf.mxu0
    %v1101 = vadd.f32 0.0, %v1100
    %v1102 = vpop.f32.mrf.mxu0
    %1103 = vmatprep.mubr.f32.mxu0 0.0
    %1104 = vmatmul.mubr.f32.gmra.mxu0 %v1024
    %v1105 = vpop.f32.mrf.mxu0
    %v1106 = vadd.f32 0.0, %v1105
    %v1107 = vpop.f32.mrf.mxu0
    %1108 = vmatprep.mubr.f32.mxu0 0.0
    %1109 = vmatmul.mubr.f32.gmra.mxu0 %v1027
    %v1110 = vpop.f32.mrf.mxu0
    %v1111 = vadd.f32 0.0, %v1110
    %v1112 = vpop.f32.mrf.mxu0
    %1113 = vdwg.mxu0
    %v1114 = vld [vmem:[%s12] sm:$0xff]
    %v1115 = vld [vmem:[%s12 + $0x8] sm:$0xff]
    %v1117 = vsel %vm177, %v1096, 0
    %v1120 = vsel %vm177, %v1101, 0
    %v1123 = vsel %vm177, %v1106, 0
    %v1126 = vsel %vm177, %v1111, 0
    %1128 = vmatprep.subr.mxu0 0.0
    %1129 = vmatpush1.msra.mxu0 0.0
    %1130 = vmatprep.subr.mxu0 0.0
    %1131 = vmatpush1.msra.mxu0 0.0
    %1132 = vmatprep.subr.mxu0 0.0
    %1133 = vmatpush1.msra.mxu0 0.0
    %1134 = vmatprep.subr.mxu0 0.0
    %1135 = vmatpush1.msra.mxu0 0.0
    %1136 = vmatprep.subr.mxu0 0.0
    %1137 = vmatpush1.msra.mxu0 0.0
    %1138 = vmatprep.subr.mxu0 0.0
    %1139 = vmatpush1.msra.mxu0 0.0
    %1140 = vmatprep.subr.mxu0 0.0
    %1141 = vmatpush1.msra.mxu0 0.0
    %1142 = vmatprep.subr.mxu0 0.0
    %1143 = vmatpush1.msra.mxu0 0.0
    %1144 = vmatprep.subr.mxu0 0.0
    %1145 = vmatpush1.msra.mxu0 0.0
    %1146 = vmatprep.subr.mxu0 0.0
    %1147 = vmatpush1.msra.mxu0 0.0
    %1148 = vmatprep.subr.mxu0 0.0
    %1149 = vmatpush1.msra.mxu0 0.0
    %1150 = vmatprep.subr.mxu0 0.0
    %1151 = vmatpush1.msra.mxu0 0.0
    %1152 = vmatprep.subr.mxu0 0.0
    %1153 = vmatpush1.msra.mxu0 0.0
    %1154 = vmatprep.subr.mxu0 0.0
    %1155 = vmatpush1.msra.mxu0 0.0
    %1156 = vmatprep.subr.mxu0 0.0
    %1157 = vmatpush1.msra.mxu0 %v1115
    %1158 = vmatprep.subr.mxu0 0.0
    %1159 = vmatpush1.msra.mxu0 %v1114
    %1160 = vmatprep.subr.mxu0 0.0
    %1161 = vmatpush2.msra.mxu0 0.0
    %1162 = vmatprep.subr.mxu0 0.0
    %1163 = vmatpush2.msra.mxu0 0.0
    %1164 = vmatprep.subr.mxu0 0.0
    %1165 = vmatpush2.msra.mxu0 0.0
    %1166 = vmatprep.subr.mxu0 0.0
    %1167 = vmatpush2.msra.mxu0 0.0
    %1168 = vmatprep.subr.mxu0 0.0
    %1169 = vmatpush2.msra.mxu0 0.0
    %1170 = vmatprep.subr.mxu0 0.0
    %1171 = vmatpush2.msra.mxu0 0.0
    %1172 = vmatprep.subr.mxu0 0.0
    %1173 = vmatpush2.msra.mxu0 0.0
    %1174 = vmatprep.subr.mxu0 0.0
    %1175 = vmatpush2.msra.mxu0 0.0
    %1176 = vmatprep.subr.mxu0 0.0
    %1177 = vmatpush2.msra.mxu0 0.0
    %1178 = vmatprep.subr.mxu0 0.0
    %1179 = vmatpush2.msra.mxu0 0.0
    %1180 = vmatprep.subr.mxu0 0.0
    %1181 = vmatpush2.msra.mxu0 0.0
    %1182 = vmatprep.subr.mxu0 0.0
    %1183 = vmatpush2.msra.mxu0 0.0
    %1184 = vmatprep.subr.mxu0 0.0
    %1185 = vmatpush2.msra.mxu0 0.0
    %1186 = vmatprep.subr.mxu0 0.0
    %1187 = vmatpush2.msra.mxu0 0.0
    %1188 = vmatprep.subr.mxu0 0.0
    %1189 = vmatpush2.msra.mxu0 0.0
    %1190 = vmatprep.subr.mxu0 0.0
    %1191 = vmatpush2.msra.mxu0 0.0
    %1192 = vmatprep.mubr.f32.mxu0 0.0
    %1193 = vmatmul.mubr.f32.gmra.mxu0 %v1117
    %v1194 = vpop.f32.mrf.mxu0
    %v1195 = vadd.f32 0.0, %v1194
    %v1196 = vpop.f32.mrf.mxu0
    %1197 = vmatprep.mubr.f32.mxu0 0.0
    %1198 = vmatmul.mubr.f32.gmra.mxu0 %v1120
    %v1199 = vpop.f32.mrf.mxu0
    %v1200 = vadd.f32 0.0, %v1199
    %v1201 = vpop.f32.mrf.mxu0
    %1202 = vmatprep.mubr.f32.mxu0 0.0
    %1203 = vmatmul.mubr.f32.gmra.mxu0 %v1123
    %v1204 = vpop.f32.mrf.mxu0
    %v1205 = vadd.f32 0.0, %v1204
    %v1206 = vpop.f32.mrf.mxu0
    %1207 = vmatprep.mubr.f32.mxu0 0.0
    %1208 = vmatmul.mubr.f32.gmra.mxu0 %v1126
    %v1209 = vpop.f32.mrf.mxu0
    %v1210 = vadd.f32 0.0, %v1209
    %v1211 = vpop.f32.mrf.mxu0
    %1212 = vdwg.mxu0
    %v1213 = vadd.f32 %v593, %v1195
    %v1214 = vadd.f32 %v594, %v1200
    %v1215 = vadd.f32 %v595, %v1205
    %v1216 = vadd.f32 %v596, %v1210
    %s1217 = scalar_lea.vmem %s9, 32
    %v1218 = vld [vmem:[%s1217] sm:$0xff]
    %v1219 = vld [vmem:[%s1217 + $0x8] sm:$0xff]
    %v1220 = vld [vmem:[%s1217 + $0x10] sm:$0xff]
    %v1221 = vld [vmem:[%s1217 + $0x18] sm:$0xff]
    %1222 = vmatprep.subr.mxu0 0.0
    %1223 = vmatpush1.msra.mxu0 0.0
    %1224 = vmatprep.subr.mxu0 0.0
    %1225 = vmatpush1.msra.mxu0 0.0
    %1226 = vmatprep.subr.mxu0 0.0
    %1227 = vmatpush1.msra.mxu0 0.0
    %1228 = vmatprep.subr.mxu0 0.0
    %1229 = vmatpush1.msra.mxu0 0.0
    %1230 = vmatprep.subr.mxu0 0.0
    %1231 = vmatpush1.msra.mxu0 0.0
    %1232 = vmatprep.subr.mxu0 0.0
    %1233 = vmatpush1.msra.mxu0 0.0
    %1234 = vmatprep.subr.mxu0 0.0
    %1235 = vmatpush1.msra.mxu0 0.0
    %1236 = vmatprep.subr.mxu0 0.0
    %1237 = vmatpush1.msra.mxu0 0.0
    %1238 = vmatprep.subr.mxu0 0.0
    %1239 = vmatpush1.msra.mxu0 0.0
    %1240 = vmatprep.subr.mxu0 0.0
    %1241 = vmatpush1.msra.mxu0 0.0
    %1242 = vmatprep.subr.mxu0 0.0
    %1243 = vmatpush1.msra.mxu0 0.0
    %1244 = vmatprep.subr.mxu0 0.0
    %1245 = vmatpush1.msra.mxu0 0.0
    %1246 = vmatprep.subr.mxu0 0.0
    %1247 = vmatpush1.msra.mxu0 %v1221
    %1248 = vmatprep.subr.mxu0 0.0
    %1249 = vmatpush1.msra.mxu0 %v1220
    %1250 = vmatprep.subr.mxu0 0.0
    %1251 = vmatpush1.msra.mxu0 %v1219
    %1252 = vmatprep.subr.mxu0 0.0
    %1253 = vmatpush1.msra.mxu0 %v1218
    %1254 = vmatprep.subr.mxu0 0.0
    %1255 = vmatpush2.msra.mxu0 0.0
    %1256 = vmatprep.subr.mxu0 0.0
    %1257 = vmatpush2.msra.mxu0 0.0
    %1258 = vmatprep.subr.mxu0 0.0
    %1259 = vmatpush2.msra.mxu0 0.0
    %1260 = vmatprep.subr.mxu0 0.0
    %1261 = vmatpush2.msra.mxu0 0.0
    %1262 = vmatprep.subr.mxu0 0.0
    %1263 = vmatpush2.msra.mxu0 0.0
    %1264 = vmatprep.subr.mxu0 0.0
    %1265 = vmatpush2.msra.mxu0 0.0
    %1266 = vmatprep.subr.mxu0 0.0
    %1267 = vmatpush2.msra.mxu0 0.0
    %1268 = vmatprep.subr.mxu0 0.0
    %1269 = vmatpush2.msra.mxu0 0.0
    %1270 = vmatprep.subr.mxu0 0.0
    %1271 = vmatpush2.msra.mxu0 0.0
    %1272 = vmatprep.subr.mxu0 0.0
    %1273 = vmatpush2.msra.mxu0 0.0
    %1274 = vmatprep.subr.mxu0 0.0
    %1275 = vmatpush2.msra.mxu0 0.0
    %1276 = vmatprep.subr.mxu0 0.0
    %1277 = vmatpush2.msra.mxu0 0.0
    %1278 = vmatprep.subr.mxu0 0.0
    %1279 = vmatpush2.msra.mxu0 0.0
    %1280 = vmatprep.subr.mxu0 0.0
    %1281 = vmatpush2.msra.mxu0 0.0
    %1282 = vmatprep.subr.mxu0 0.0
    %1283 = vmatpush2.msra.mxu0 0.0
    %1284 = vmatprep.subr.mxu0 0.0
    %1285 = vmatpush2.msra.mxu0 0.0
    %1286 = vmatprep.mubr.f32.mxu0 0.0
    %1287 = vmatmul.mubr.f32.gmra.mxu0 %v367
    %v1288 = vpop.f32.mrf.mxu0
    %v1289 = vadd.f32 0.0, %v1288
    %v1290 = vpop.f32.mrf.mxu0
    %1291 = vmatprep.mubr.f32.mxu0 0.0
    %1292 = vmatmul.mubr.f32.gmra.mxu0 %v370
    %v1293 = vpop.f32.mrf.mxu0
    %v1294 = vadd.f32 0.0, %v1293
    %v1295 = vpop.f32.mrf.mxu0
    %1296 = vmatprep.mubr.f32.mxu0 0.0
    %1297 = vmatmul.mubr.f32.gmra.mxu0 %v373
    %v1298 = vpop.f32.mrf.mxu0
    %v1299 = vadd.f32 0.0, %v1298
    %v1300 = vpop.f32.mrf.mxu0
    %1301 = vmatprep.mubr.f32.mxu0 0.0
    %1302 = vmatmul.mubr.f32.gmra.mxu0 %v376
    %v1303 = vpop.f32.mrf.mxu0
    %v1304 = vadd.f32 0.0, %v1303
    %v1305 = vpop.f32.mrf.mxu0
    %1306 = vdwg.mxu0
    %s1307 = scalar_lea.vmem %s10, 32
    %v1308 = vld [vmem:[%s1307] sm:$0xff]
    %v1309 = vld [vmem:[%s1307 + $0x8] sm:$0xff]
    %v1310 = vld [vmem:[%s1307 + $0x10] sm:$0xff]
    %v1311 = vld [vmem:[%s1307 + $0x18] sm:$0xff]
    %1312 = vmatprep.subr.mxu0 0.0
    %1313 = vmatpush1.msra.mxu0 0.0
    %1314 = vmatprep.subr.mxu0 0.0
    %1315 = vmatpush1.msra.mxu0 0.0
    %1316 = vmatprep.subr.mxu0 0.0
    %1317 = vmatpush1.msra.mxu0 0.0
    %1318 = vmatprep.subr.mxu0 0.0
    %1319 = vmatpush1.msra.mxu0 0.0
    %1320 = vmatprep.subr.mxu0 0.0
    %1321 = vmatpush1.msra.mxu0 0.0
    %1322 = vmatprep.subr.mxu0 0.0
    %1323 = vmatpush1.msra.mxu0 0.0
    %1324 = vmatprep.subr.mxu0 0.0
    %1325 = vmatpush1.msra.mxu0 0.0
    %1326 = vmatprep.subr.mxu0 0.0
    %1327 = vmatpush1.msra.mxu0 0.0
    %1328 = vmatprep.subr.mxu0 0.0
    %1329 = vmatpush1.msra.mxu0 0.0
    %1330 = vmatprep.subr.mxu0 0.0
    %1331 = vmatpush1.msra.mxu0 0.0
    %1332 = vmatprep.subr.mxu0 0.0
    %1333 = vmatpush1.msra.mxu0 0.0
    %1334 = vmatprep.subr.mxu0 0.0
    %1335 = vmatpush1.msra.mxu0 0.0
    %1336 = vmatprep.subr.mxu0 0.0
    %1337 = vmatpush1.msra.mxu0 %v1311
    %1338 = vmatprep.subr.mxu0 0.0
    %1339 = vmatpush1.msra.mxu0 %v1310
    %1340 = vmatprep.subr.mxu0 0.0
    %1341 = vmatpush1.msra.mxu0 %v1309
    %1342 = vmatprep.subr.mxu0 0.0
    %1343 = vmatpush1.msra.mxu0 %v1308
    %1344 = vmatprep.subr.mxu0 0.0
    %1345 = vmatpush2.msra.mxu0 0.0
    %1346 = vmatprep.subr.mxu0 0.0
    %1347 = vmatpush2.msra.mxu0 0.0
    %1348 = vmatprep.subr.mxu0 0.0
    %1349 = vmatpush2.msra.mxu0 0.0
    %1350 = vmatprep.subr.mxu0 0.0
    %1351 = vmatpush2.msra.mxu0 0.0
    %1352 = vmatprep.subr.mxu0 0.0
    %1353 = vmatpush2.msra.mxu0 0.0
    %1354 = vmatprep.subr.mxu0 0.0
    %1355 = vmatpush2.msra.mxu0 0.0
    %1356 = vmatprep.subr.mxu0 0.0
    %1357 = vmatpush2.msra.mxu0 0.0
    %1358 = vmatprep.subr.mxu0 0.0
    %1359 = vmatpush2.msra.mxu0 0.0
    %1360 = vmatprep.subr.mxu0 0.0
    %1361 = vmatpush2.msra.mxu0 0.0
    %1362 = vmatprep.subr.mxu0 0.0
    %1363 = vmatpush2.msra.mxu0 0.0
    %1364 = vmatprep.subr.mxu0 0.0
    %1365 = vmatpush2.msra.mxu0 0.0
    %1366 = vmatprep.subr.mxu0 0.0
    %1367 = vmatpush2.msra.mxu0 0.0
    %1368 = vmatprep.subr.mxu0 0.0
    %1369 = vmatpush2.msra.mxu0 0.0
    %1370 = vmatprep.subr.mxu0 0.0
    %1371 = vmatpush2.msra.mxu0 0.0
    %1372 = vmatprep.subr.mxu0 0.0
    %1373 = vmatpush2.msra.mxu0 0.0
    %1374 = vmatprep.subr.mxu0 0.0
    %1375 = vmatpush2.msra.mxu0 0.0
    %1376 = vmatprep.mubr.f32.mxu0 0.0
    %1377 = vmatmul.mubr.f32.gmra.mxu0 %v367
    %v1378 = vpop.f32.mrf.mxu0
    %v1379 = vadd.f32 0.0, %v1378
    %v1380 = vpop.f32.mrf.mxu0
    %1381 = vmatprep.mubr.f32.mxu0 0.0
    %1382 = vmatmul.mubr.f32.gmra.mxu0 %v370
    %v1383 = vpop.f32.mrf.mxu0
    %v1384 = vadd.f32 0.0, %v1383
    %v1385 = vpop.f32.mrf.mxu0
    %1386 = vmatprep.mubr.f32.mxu0 0.0
    %1387 = vmatmul.mubr.f32.gmra.mxu0 %v373
    %v1388 = vpop.f32.mrf.mxu0
    %v1389 = vadd.f32 0.0, %v1388
    %v1390 = vpop.f32.mrf.mxu0
    %1391 = vmatprep.mubr.f32.mxu0 0.0
    %1392 = vmatmul.mubr.f32.gmra.mxu0 %v376
    %v1393 = vpop.f32.mrf.mxu0
    %v1394 = vadd.f32 0.0, %v1393
    %v1395 = vpop.f32.mrf.mxu0
    %1396 = vdwg.mxu0
    %s1397 = scalar_lea.vmem %s11, 32
    %v1398 = vld [vmem:[%s1397] sm:$0xff]
    %v1399 = vld [vmem:[%s1397 + $0x8] sm:$0xff]
    %v1400 = vld [vmem:[%s1397 + $0x10] sm:$0xff]
    %v1401 = vld [vmem:[%s1397 + $0x18] sm:$0xff]
    %1402 = vmatprep.subr.mxu0 0.0
    %1403 = vmatpush1.msra.mxu0 0.0
    %1404 = vmatprep.subr.mxu0 0.0
    %1405 = vmatpush1.msra.mxu0 0.0
    %1406 = vmatprep.subr.mxu0 0.0
    %1407 = vmatpush1.msra.mxu0 0.0
    %1408 = vmatprep.subr.mxu0 0.0
    %1409 = vmatpush1.msra.mxu0 0.0
    %1410 = vmatprep.subr.mxu0 0.0
    %1411 = vmatpush1.msra.mxu0 0.0
    %1412 = vmatprep.subr.mxu0 0.0
    %1413 = vmatpush1.msra.mxu0 0.0
    %1414 = vmatprep.subr.mxu0 0.0
    %1415 = vmatpush1.msra.mxu0 0.0
    %1416 = vmatprep.subr.mxu0 0.0
    %1417 = vmatpush1.msra.mxu0 0.0
    %1418 = vmatprep.subr.mxu0 0.0
    %1419 = vmatpush1.msra.mxu0 0.0
    %1420 = vmatprep.subr.mxu0 0.0
    %1421 = vmatpush1.msra.mxu0 0.0
    %1422 = vmatprep.subr.mxu0 0.0
    %1423 = vmatpush1.msra.mxu0 0.0
    %1424 = vmatprep.subr.mxu0 0.0
    %1425 = vmatpush1.msra.mxu0 0.0
    %1426 = vmatprep.subr.mxu0 0.0
    %1427 = vmatpush1.msra.mxu0 %v1401
    %1428 = vmatprep.subr.mxu0 0.0
    %1429 = vmatpush1.msra.mxu0 %v1400
    %1430 = vmatprep.subr.mxu0 0.0
    %1431 = vmatpush1.msra.mxu0 %v1399
    %1432 = vmatprep.subr.mxu0 0.0
    %1433 = vmatpush1.msra.mxu0 %v1398
    %1434 = vmatprep.subr.mxu0 0.0
    %1435 = vmatpush2.msra.mxu0 0.0
    %1436 = vmatprep.subr.mxu0 0.0
    %1437 = vmatpush2.msra.mxu0 0.0
    %1438 = vmatprep.subr.mxu0 0.0
    %1439 = vmatpush2.msra.mxu0 0.0
    %1440 = vmatprep.subr.mxu0 0.0
    %1441 = vmatpush2.msra.mxu0 0.0
    %1442 = vmatprep.subr.mxu0 0.0
    %1443 = vmatpush2.msra.mxu0 0.0
    %1444 = vmatprep.subr.mxu0 0.0
    %1445 = vmatpush2.msra.mxu0 0.0
    %1446 = vmatprep.subr.mxu0 0.0
    %1447 = vmatpush2.msra.mxu0 0.0
    %1448 = vmatprep.subr.mxu0 0.0
    %1449 = vmatpush2.msra.mxu0 0.0
    %1450 = vmatprep.subr.mxu0 0.0
    %1451 = vmatpush2.msra.mxu0 0.0
    %1452 = vmatprep.subr.mxu0 0.0
    %1453 = vmatpush2.msra.mxu0 0.0
    %1454 = vmatprep.subr.mxu0 0.0
    %1455 = vmatpush2.msra.mxu0 0.0
    %1456 = vmatprep.subr.mxu0 0.0
    %1457 = vmatpush2.msra.mxu0 0.0
    %1458 = vmatprep.subr.mxu0 0.0
    %1459 = vmatpush2.msra.mxu0 0.0
    %1460 = vmatprep.subr.mxu0 0.0
    %1461 = vmatpush2.msra.mxu0 0.0
    %1462 = vmatprep.subr.mxu0 0.0
    %1463 = vmatpush2.msra.mxu0 0.0
    %1464 = vmatprep.subr.mxu0 0.0
    %1465 = vmatpush2.msra.mxu0 0.0
    %1466 = vmatprep.mubr.f32.mxu0 0.0
    %1467 = vmatmul.mubr.f32.gmra.mxu0 %v367
    %v1468 = vpop.f32.mrf.mxu0
    %v1469 = vadd.f32 0.0, %v1468
    %v1470 = vpop.f32.mrf.mxu0
    %1471 = vmatprep.mubr.f32.mxu0 0.0
    %1472 = vmatmul.mubr.f32.gmra.mxu0 %v370
    %v1473 = vpop.f32.mrf.mxu0
    %v1474 = vadd.f32 0.0, %v1473
    %v1475 = vpop.f32.mrf.mxu0
    %1476 = vmatprep.mubr.f32.mxu0 0.0
    %1477 = vmatmul.mubr.f32.gmra.mxu0 %v373
    %v1478 = vpop.f32.mrf.mxu0
    %v1479 = vadd.f32 0.0, %v1478
    %v1480 = vpop.f32.mrf.mxu0
    %1481 = vmatprep.mubr.f32.mxu0 0.0
    %1482 = vmatmul.mubr.f32.gmra.mxu0 %v376
    %v1483 = vpop.f32.mrf.mxu0
    %v1484 = vadd.f32 0.0, %v1483
    %v1485 = vpop.f32.mrf.mxu0
    %1486 = vdwg.mxu0
    %v1488 = vsel %vm177, %v1289, 0
    %v1491 = vsel %vm177, %v1294, 0
    %v1494 = vsel %vm177, %v1299, 0
    %v1497 = vsel %vm177, %v1304, 0
    %v1500 = vsel %vm177, %v1379, 0
    %v1503 = vsel %vm177, %v1384, 0
    %v1506 = vsel %vm177, %v1389, 0
    %v1509 = vsel %vm177, %v1394, 0
    %1511 = vmatprep.subr.mxu0 0.0
    %1512 = vmatpush1.xpose.msra.mxu0 0.0
    %1513 = vmatprep.subr.mxu0 0.0
    %1514 = vmatpush1.xpose.msra.mxu0 0.0
    %1515 = vmatprep.subr.mxu0 0.0
    %1516 = vmatpush1.xpose.msra.mxu0 0.0
    %1517 = vmatprep.subr.mxu0 0.0
    %1518 = vmatpush1.xpose.msra.mxu0 0.0
    %1519 = vmatprep.subr.mxu0 0.0
    %1520 = vmatpush1.xpose.msra.mxu0 0.0
    %1521 = vmatprep.subr.mxu0 0.0
    %1522 = vmatpush1.xpose.msra.mxu0 0.0
    %1523 = vmatprep.subr.mxu0 0.0
    %1524 = vmatpush1.xpose.msra.mxu0 0.0
    %1525 = vmatprep.subr.mxu0 0.0
    %1526 = vmatpush1.xpose.msra.mxu0 0.0
    %1527 = vmatprep.subr.mxu0 0.0
    %1528 = vmatpush1.xpose.msra.mxu0 0.0
    %1529 = vmatprep.subr.mxu0 0.0
    %1530 = vmatpush1.xpose.msra.mxu0 0.0
    %1531 = vmatprep.subr.mxu0 0.0
    %1532 = vmatpush1.xpose.msra.mxu0 0.0
    %1533 = vmatprep.subr.mxu0 0.0
    %1534 = vmatpush1.xpose.msra.mxu0 0.0
    %1535 = vmatprep.subr.mxu0 0.0
    %1536 = vmatpush1.xpose.msra.mxu0 %v1509
    %1537 = vmatprep.subr.mxu0 0.0
    %1538 = vmatpush1.xpose.msra.mxu0 %v1506
    %1539 = vmatprep.subr.mxu0 0.0
    %1540 = vmatpush1.xpose.msra.mxu0 %v1503
    %1541 = vmatprep.subr.mxu0 0.0
    %1542 = vmatpush1.xpose.msra.mxu0 %v1500
    %1543 = vmatprep.subr.mxu0 0.0
    %1544 = vmatpush2.xpose.msra.mxu0 0.0
    %1545 = vmatprep.subr.mxu0 0.0
    %1546 = vmatpush2.xpose.msra.mxu0 0.0
    %1547 = vmatprep.subr.mxu0 0.0
    %1548 = vmatpush2.xpose.msra.mxu0 0.0
    %1549 = vmatprep.subr.mxu0 0.0
    %1550 = vmatpush2.xpose.msra.mxu0 0.0
    %1551 = vmatprep.subr.mxu0 0.0
    %1552 = vmatpush2.xpose.msra.mxu0 0.0
    %1553 = vmatprep.subr.mxu0 0.0
    %1554 = vmatpush2.xpose.msra.mxu0 0.0
    %1555 = vmatprep.subr.mxu0 0.0
    %1556 = vmatpush2.xpose.msra.mxu0 0.0
    %1557 = vmatprep.subr.mxu0 0.0
    %1558 = vmatpush2.xpose.msra.mxu0 0.0
    %1559 = vmatprep.subr.mxu0 0.0
    %1560 = vmatpush2.xpose.msra.mxu0 0.0
    %1561 = vmatprep.subr.mxu0 0.0
    %1562 = vmatpush2.xpose.msra.mxu0 0.0
    %1563 = vmatprep.subr.mxu0 0.0
    %1564 = vmatpush2.xpose.msra.mxu0 0.0
    %1565 = vmatprep.subr.mxu0 0.0
    %1566 = vmatpush2.xpose.msra.mxu0 0.0
    %1567 = vmatprep.subr.mxu0 0.0
    %1568 = vmatpush2.xpose.msra.mxu0 0.0
    %1569 = vmatprep.subr.mxu0 0.0
    %1570 = vmatpush2.xpose.msra.mxu0 0.0
    %1571 = vmatprep.subr.mxu0 0.0
    %1572 = vmatpush2.xpose.msra.mxu0 0.0
    %1573 = vmatprep.subr.mxu0 0.0
    %1574 = vmatpush2.xpose.msra.mxu0 0.0
    %1575 = vmatprep.mubr.f32.mxu0 0.0
    %1576 = vmatmul.mubr.f32.gmra.mxu0 %v1488
    %v1577 = vpop.f32.mrf.mxu0
    %v1578 = vadd.f32 %v589, %v1577
    %v1579 = vpop.f32.mrf.mxu0
    %1580 = vmatprep.mubr.f32.mxu0 0.0
    %1581 = vmatmul.mubr.f32.gmra.mxu0 %v1491
    %v1582 = vpop.f32.mrf.mxu0
    %v1583 = vadd.f32 %v590, %v1582
    %v1584 = vpop.f32.mrf.mxu0
    %1585 = vmatprep.mubr.f32.mxu0 0.0
    %1586 = vmatmul.mubr.f32.gmra.mxu0 %v1494
    %v1587 = vpop.f32.mrf.mxu0
    %v1588 = vadd.f32 %v591, %v1587
    %v1589 = vpop.f32.mrf.mxu0
    %1590 = vmatprep.mubr.f32.mxu0 0.0
    %1591 = vmatmul.mubr.f32.gmra.mxu0 %v1497
    %v1592 = vpop.f32.mrf.mxu0
    %v1593 = vadd.f32 %v592, %v1592
    %v1594 = vpop.f32.mrf.mxu0
    %1595 = vdwg.mxu0
    %v1596 = vsel %vm66, %v1578, -inf
    %1597 = vmax.xlane.f32.xlu0 %v1596
    %v1598 = vpop.xlane.xlu0 %1597
    %v1599 = vsel %vm66, %v1583, -inf
    %1600 = vmax.xlane.f32.xlu0 %v1599
    %v1601 = vpop.xlane.xlu0 %1600
    %v1602 = vsel %vm66, %v1588, -inf
    %1603 = vmax.xlane.f32.xlu0 %v1602
    %v1604 = vpop.xlane.xlu0 %1603
    %v1605 = vsel %vm66, %v1593, -inf
    %1606 = vmax.xlane.f32.xlu0 %v1605
    %v1607 = vpop.xlane.xlu0 %1606
    %v1608 = vsub.f32 %v1578, %v1598
    %v1609 = vsub.f32 %v1583, %v1601
    %v1610 = vsub.f32 %v1588, %v1604
    %v1611 = vsub.f32 %v1593, %v1607
    %v1612 = vmul.f32 %v1608, 1.442695
    %v1613 = vpow.pop %v1612
    %v1614 = vmul.f32 %v1609, 1.442695
    %v1615 = vpow.pop %v1614
    %v1616 = vmul.f32 %v1610, 1.442695
    %v1617 = vpow.pop %v1616
    %v1618 = vmul.f32 %v1611, 1.442695
    %v1619 = vpow.pop %v1618
    %v1620 = vsel %vm66, %v1613, 0.0
    %1621 = vadd.xlane.f32.xlu0 %v1620
    %v1622 = vpop.xlane.xlu0 %1621
    %v1623 = vsel %vm66, %v1615, 0.0
    %1624 = vadd.xlane.f32.xlu0 %v1623
    %v1625 = vpop.xlane.xlu0 %1624
    %v1626 = vsel %vm66, %v1617, 0.0
    %1627 = vadd.xlane.f32.xlu0 %v1626
    %v1628 = vpop.xlane.xlu0 %1627
    %v1629 = vsel %vm66, %v1619, 0.0
    %1630 = vadd.xlane.f32.xlu0 %v1629
    %v1631 = vpop.xlane.xlu0 %1630
    %v1632 = vrcp.pop %v1622
    %v1633 = vrcp.pop %v1625
    %v1634 = vrcp.pop %v1628
    %v1635 = vrcp.pop %v1631
    %v1636 = vmul.f32 %v1613, %v1632
    %v1637 = vmul.f32 %v1615, %v1633
    %v1638 = vmul.f32 %v1617, %v1634
    %v1639 = vmul.f32 %v1619, %v1635
    %v1641 = vsel %vm66, %v1636, 0
    %v1644 = vsel %vm66, %v1637, 0
    %v1647 = vsel %vm66, %v1638, 0
    %v1650 = vsel %vm66, %v1639, 0
    %1652 = vmatprep.subr.mxu0 0.0
    %1653 = vmatpush1.msra.mxu0 0.0
    %1654 = vmatprep.subr.mxu0 0.0
    %1655 = vmatpush1.msra.mxu0 0.0
    %1656 = vmatprep.subr.mxu0 0.0
    %1657 = vmatpush1.msra.mxu0 0.0
    %1658 = vmatprep.subr.mxu0 0.0
    %1659 = vmatpush1.msra.mxu0 0.0
    %1660 = vmatprep.subr.mxu0 0.0
    %1661 = vmatpush1.msra.mxu0 0.0
    %1662 = vmatprep.subr.mxu0 0.0
    %1663 = vmatpush1.msra.mxu0 0.0
    %1664 = vmatprep.subr.mxu0 0.0
    %1665 = vmatpush1.msra.mxu0 0.0
    %1666 = vmatprep.subr.mxu0 0.0
    %1667 = vmatpush1.msra.mxu0 0.0
    %1668 = vmatprep.subr.mxu0 0.0
    %1669 = vmatpush1.msra.mxu0 0.0
    %1670 = vmatprep.subr.mxu0 0.0
    %1671 = vmatpush1.msra.mxu0 0.0
    %1672 = vmatprep.subr.mxu0 0.0
    %1673 = vmatpush1.msra.mxu0 0.0
    %1674 = vmatprep.subr.mxu0 0.0
    %1675 = vmatpush1.msra.mxu0 0.0
    %1676 = vmatprep.subr.mxu0 0.0
    %1677 = vmatpush1.msra.mxu0 %v1484
    %1678 = vmatprep.subr.mxu0 0.0
    %1679 = vmatpush1.msra.mxu0 %v1479
    %1680 = vmatprep.subr.mxu0 0.0
    %1681 = vmatpush1.msra.mxu0 %v1474
    %1682 = vmatprep.subr.mxu0 0.0
    %1683 = vmatpush1.msra.mxu0 %v1469
    %1684 = vmatprep.subr.mxu0 0.0
    %1685 = vmatpush2.msra.mxu0 0.0
    %1686 = vmatprep.subr.mxu0 0.0
    %1687 = vmatpush2.msra.mxu0 0.0
    %1688 = vmatprep.subr.mxu0 0.0
    %1689 = vmatpush2.msra.mxu0 0.0
    %1690 = vmatprep.subr.mxu0 0.0
    %1691 = vmatpush2.msra.mxu0 0.0
    %1692 = vmatprep.subr.mxu0 0.0
    %1693 = vmatpush2.msra.mxu0 0.0
    %1694 = vmatprep.subr.mxu0 0.0
    %1695 = vmatpush2.msra.mxu0 0.0
    %1696 = vmatprep.subr.mxu0 0.0
    %1697 = vmatpush2.msra.mxu0 0.0
    %1698 = vmatprep.subr.mxu0 0.0
    %1699 = vmatpush2.msra.mxu0 0.0
    %1700 = vmatprep.subr.mxu0 0.0
    %1701 = vmatpush2.msra.mxu0 0.0
    %1702 = vmatprep.subr.mxu0 0.0
    %1703 = vmatpush2.msra.mxu0 0.0
    %1704 = vmatprep.subr.mxu0 0.0
    %1705 = vmatpush2.msra.mxu0 0.0
    %1706 = vmatprep.subr.mxu0 0.0
    %1707 = vmatpush2.msra.mxu0 0.0
    %1708 = vmatprep.subr.mxu0 0.0
    %1709 = vmatpush2.msra.mxu0 0.0
    %1710 = vmatprep.subr.mxu0 0.0
    %1711 = vmatpush2.msra.mxu0 0.0
    %1712 = vmatprep.subr.mxu0 0.0
    %1713 = vmatpush2.msra.mxu0 0.0
    %1714 = vmatprep.subr.mxu0 0.0
    %1715 = vmatpush2.msra.mxu0 0.0
    %1716 = vmatprep.mubr.f32.mxu0 0.0
    %1717 = vmatmul.mubr.f32.gmra.mxu0 %v1641
    %v1718 = vpop.f32.mrf.mxu0
    %v1719 = vadd.f32 0.0, %v1718
    %v1720 = vpop.f32.mrf.mxu0
    %1721 = vmatprep.mubr.f32.mxu0 0.0
    %1722 = vmatmul.mubr.f32.gmra.mxu0 %v1644
    %v1723 = vpop.f32.mrf.mxu0
    %v1724 = vadd.f32 0.0, %v1723
    %v1725 = vpop.f32.mrf.mxu0
    %1726 = vmatprep.mubr.f32.mxu0 0.0
    %1727 = vmatmul.mubr.f32.gmra.mxu0 %v1647
    %v1728 = vpop.f32.mrf.mxu0
    %v1729 = vadd.f32 0.0, %v1728
    %v1730 = vpop.f32.mrf.mxu0
    %1731 = vmatprep.mubr.f32.mxu0 0.0
    %1732 = vmatmul.mubr.f32.gmra.mxu0 %v1650
    %v1733 = vpop.f32.mrf.mxu0
    %v1734 = vadd.f32 0.0, %v1733
    %v1735 = vpop.f32.mrf.mxu0
    %1736 = vdwg.mxu0
    %s1737 = scalar_lea.vmem %s12, 16
    %v1738 = vld [vmem:[%s1737] sm:$0xff]
    %v1739 = vld [vmem:[%s1737 + $0x8] sm:$0xff]
    %v1741 = vsel %vm177, %v1719, 0
    %v1744 = vsel %vm177, %v1724, 0
    %v1747 = vsel %vm177, %v1729, 0
    %v1750 = vsel %vm177, %v1734, 0
    %1752 = vmatprep.subr.mxu0 0.0
    %1753 = vmatpush1.msra.mxu0 0.0
    %1754 = vmatprep.subr.mxu0 0.0
    %1755 = vmatpush1.msra.mxu0 0.0
    %1756 = vmatprep.subr.mxu0 0.0
    %1757 = vmatpush1.msra.mxu0 0.0
    %1758 = vmatprep.subr.mxu0 0.0
    %1759 = vmatpush1.msra.mxu0 0.0
    %1760 = vmatprep.subr.mxu0 0.0
    %1761 = vmatpush1.msra.mxu0 0.0
    %1762 = vmatprep.subr.mxu0 0.0
    %1763 = vmatpush1.msra.mxu0 0.0
    %1764 = vmatprep.subr.mxu0 0.0
    %1765 = vmatpush1.msra.mxu0 0.0
    %1766 = vmatprep.subr.mxu0 0.0
    %1767 = vmatpush1.msra.mxu0 0.0
    %1768 = vmatprep.subr.mxu0 0.0
    %1769 = vmatpush1.msra.mxu0 0.0
    %1770 = vmatprep.subr.mxu0 0.0
    %1771 = vmatpush1.msra.mxu0 0.0
    %1772 = vmatprep.subr.mxu0 0.0
    %1773 = vmatpush1.msra.mxu0 0.0
    %1774 = vmatprep.subr.mxu0 0.0
    %1775 = vmatpush1.msra.mxu0 0.0
    %1776 = vmatprep.subr.mxu0 0.0
    %1777 = vmatpush1.msra.mxu0 0.0
    %1778 = vmatprep.subr.mxu0 0.0
    %1779 = vmatpush1.msra.mxu0 0.0
    %1780 = vmatprep.subr.mxu0 0.0
    %1781 = vmatpush1.msra.mxu0 %v1739
    %1782 = vmatprep.subr.mxu0 0.0
    %1783 = vmatpush1.msra.mxu0 %v1738
    %1784 = vmatprep.subr.mxu0 0.0
    %1785 = vmatpush2.msra.mxu0 0.0
    %1786 = vmatprep.subr.mxu0 0.0
    %1787 = vmatpush2.msra.mxu0 0.0
    %1788 = vmatprep.subr.mxu0 0.0
    %1789 = vmatpush2.msra.mxu0 0.0
    %1790 = vmatprep.subr.mxu0 0.0
    %1791 = vmatpush2.msra.mxu0 0.0
    %1792 = vmatprep.subr.mxu0 0.0
    %1793 = vmatpush2.msra.mxu0 0.0
    %1794 = vmatprep.subr.mxu0 0.0
    %1795 = vmatpush2.msra.mxu0 0.0
    %1796 = vmatprep.subr.mxu0 0.0
    %1797 = vmatpush2.msra.mxu0 0.0
    %1798 = vmatprep.subr.mxu0 0.0
    %1799 = vmatpush2.msra.mxu0 0.0
    %1800 = vmatprep.subr.mxu0 0.0
    %1801 = vmatpush2.msra.mxu0 0.0
    %1802 = vmatprep.subr.mxu0 0.0
    %1803 = vmatpush2.msra.mxu0 0.0
    %1804 = vmatprep.subr.mxu0 0.0
    %1805 = vmatpush2.msra.mxu0 0.0
    %1806 = vmatprep.subr.mxu0 0.0
    %1807 = vmatpush2.msra.mxu0 0.0
    %1808 = vmatprep.subr.mxu0 0.0
    %1809 = vmatpush2.msra.mxu0 0.0
    %1810 = vmatprep.subr.mxu0 0.0
    %1811 = vmatpush2.msra.mxu0 0.0
    %1812 = vmatprep.subr.mxu0 0.0
    %1813 = vmatpush2.msra.mxu0 0.0
    %1814 = vmatprep.subr.mxu0 0.0
    %1815 = vmatpush2.msra.mxu0 0.0
    %1816 = vmatprep.mubr.f32.mxu0 0.0
    %1817 = vmatmul.mubr.f32.gmra.mxu0 %v1741
    %v1818 = vpop.f32.mrf.mxu0
    %v1819 = vadd.f32 0.0, %v1818
    %v1820 = vpop.f32.mrf.mxu0
    %1821 = vmatprep.mubr.f32.mxu0 0.0
    %1822 = vmatmul.mubr.f32.gmra.mxu0 %v1744
    %v1823 = vpop.f32.mrf.mxu0
    %v1824 = vadd.f32 0.0, %v1823
    %v1825 = vpop.f32.mrf.mxu0
    %1826 = vmatprep.mubr.f32.mxu0 0.0
    %1827 = vmatmul.mubr.f32.gmra.mxu0 %v1747
    %v1828 = vpop.f32.mrf.mxu0
    %v1829 = vadd.f32 0.0, %v1828
    %v1830 = vpop.f32.mrf.mxu0
    %1831 = vmatprep.mubr.f32.mxu0 0.0
    %1832 = vmatmul.mubr.f32.gmra.mxu0 %v1750
    %v1833 = vpop.f32.mrf.mxu0
    %v1834 = vadd.f32 0.0, %v1833
    %v1835 = vpop.f32.mrf.mxu0
    %1836 = vdwg.mxu0
    %v1837 = vadd.f32 %v1213, %v1819
    %v1838 = vadd.f32 %v1214, %v1824
    %v1839 = vadd.f32 %v1215, %v1829
    %v1840 = vadd.f32 %v1216, %v1834
    %1841 = vst.msk [vmem:[#allocation2] sm:$0xff] %vm66, %v1837
    %1842 = vst.msk [vmem:[#allocation2 + $0x8] sm:$0xff] %vm66, %v1838
    %1843 = vst.msk [vmem:[#allocation2 + $0x10] sm:$0xff] %vm66, %v1839
    %1844 = vst.msk [vmem:[#allocation2 + $0x18] sm:$0xff] %vm66, %v1840
    // Predicated region
    $region62: #{tpu_custom_call.1} parent=1 // pred_check
      _
    $region63: #{tpu_custom_call.1} parent=1 // pred_check_branch
      %1846 = sbr.rel (0) target = $region65
    $region64: #{tpu_custom_call.1} parent=1 // pred_region
      %s1848 = ssub.s32 512, 512
      %1849 = vsyncadd [#allocation3], %s1848
      %s1850 = sshll.u32 [#allocation2], 4
      %s1851 = int_to_ptr.vmem [resolvable:$true] %s1850
      %1856 = dma.vmem_to_hbm [thread:$0]  %s1851, 512, %s15, [#allocation3], 128, 128, 8
    $region65: #{tpu_custom_call.1} parent=1 // pred_fallthru
      _
    // Predicated region
    $region66: #{tpu_custom_call.1} parent=1 // pred_check
      _
    $region67: #{tpu_custom_call.1} parent=1 // pred_check_branch
      %1858 = sbr.rel (0) target = $region69
    $region68: #{tpu_custom_call.1} parent=1 // pred_region
      %1859 = dma.done [#allocation3], 512
    $region69: #{tpu_custom_call.1} parent=1 // pred_fallthru
      _
    %1860 = vsyncpa [#allocation3], 1

</llo_original>
